<compile_context>
chip_gen: v6e
topology: v6e:2x2x1
jax: 0.10.0
libtpu: 0.0.40
codegen_flags: <defaults>
</compile_context>

<pallas_src>
import functools

import jax
import jax.numpy as jnp
from jax.experimental import pallas as pl
from jax.experimental.pallas import tpu as pltpu


# ------------------------------- helpers -------------------------------------


def _round_up(x, m):
    return (x + m - 1) // m * m


def _out_size(size, k, stride, pad, dil):
    return (size + 2 * pad - dil * (k - 1) - 1) // stride + 1


def _choose_th(H_out, W_out):
    """Pick an output-row tile TH (divisor of H_out) whose flattened spatial extent
    TH*W_out is 128..1024 (multiple of 8) -> lane/sublane friendly output tiles and
    >1 grid step for pipelining/megacore.  Fall back to the full H_out."""
    for d in range(1, H_out + 1):
        if H_out % d:
            continue
        s = d * W_out
        if s % 8:
            continue
        if 128 <= s <= 1024:
            return d
    return H_out


def _fill_band(x_ref, band_ref, row0, H, W, PAD):
    """Copy the input rows needed by the current output tile into a zero-padded
    VMEM band scratch (handles conv zero-padding in-kernel, no host jnp.pad)."""
    rows_in = band_ref.shape[0]
    if PAD > 0:
        band_ref[...] = jnp.zeros_like(band_ref)
    for r in range(rows_in):
        src = row0 + (r - PAD)  # unpadded source row (traced scalar)
        if PAD > 0:
            @pl.when(jnp.logical_and(src >= 0, src < H))
            def _copy(src=src, r=r):
                band_ref[pl.ds(r, 1), pl.ds(PAD, W), :] = x_ref[0, pl.ds(src, 1), :, :]
        else:
            band_ref[pl.ds(r, 1), :, :] = x_ref[0, pl.ds(src, 1), :, :]


# ----------------------------- Pallas kernels ---------------------------------


def _dense_conv_kernel(x_ref, w_ref, o_ref, band_ref, col_ref, *,
                       KH, KW, H, W, PAD, stride, dilation, TH, W_out):
    # x_ref:    (1, H, W, Cin)            whole (unpadded) image, resident per batch
    # w_ref:    (KH*KW*Cin, Cout_pad)     taps folded into the contraction dim
    # o_ref:    (1, TH*W_out, Cout_pad)   lane-dense output tile
    # band_ref: (rows_in, W+2*PAD, Cin)   zero-padded input rows for this tile
    # col_ref:  (TH*W_out, KH*KW*Cin)     im2col patch matrix (native dtype)
    Cin = x_ref.shape[-1]
    row0 = pl.program_id(1) * (TH * stride)  # first padded input row of this tile

    _fill_band(x_ref, band_ref, row0, H, W, PAD)
    band = band_ref[...]

    hs = (TH - 1) * stride + 1
    ws = (W_out - 1) * stride + 1
    for kh in range(KH):
        for kw in range(KW):
            h0 = kh * dilation
            w0 = kw * dilation
            patch = band[h0:h0 + hs:stride, w0:w0 + ws:stride, :]   # (TH, W_out, Cin)
            tap = kh * KW + kw
            col_ref[:, tap * Cin:(tap + 1) * Cin] = patch.reshape(TH * W_out, Cin)

    # Single MXU contraction over K = KH*KW*Cin, native-dtype operands, f32 accum.
    o_ref[0] = jnp.dot(col_ref[...], w_ref[...],
                       preferred_element_type=jnp.float32).astype(o_ref.dtype)


def _dw_conv_kernel(x_ref, wdw_ref, *rest,
                    KH, KW, H, W, PAD, stride, dilation, TH, W_out, fused):
    # x_ref:    (1, H, W, C)
    # wdw_ref:  (KH*KW, 1, C)             per-channel depthwise taps
    # if fused: wpw_ref: (C, Cout_pad)    1x1 pointwise weight (fused in-kernel)
    # o_ref:    (1, TH*W_out, Cout_pad) if fused else (1, TH, W_out, C)
    # band_ref: (rows_in, W+2*PAD, C)
    # acc_ref:  (TH, W_out, C) f32        VMEM scratch accumulator
    if fused:
        wpw_ref, o_ref, band_ref, acc_ref = rest
    else:
        o_ref, band_ref, acc_ref = rest

    row0 = pl.program_id(1) * (TH * stride)
    _fill_band(x_ref, band_ref, row0, H, W, PAD)
    band = band_ref[...]

    acc_ref[...] = jnp.zeros_like(acc_ref)
    hs = (TH - 1) * stride + 1
    ws = (W_out - 1) * stride + 1
    for kh in range(KH):
        for kw in range(KW):
            h0 = kh * dilation
            w0 = kw * dilation
            patch = band[h0:h0 + hs:stride, w0:w0 + ws:stride, :]   # (TH, W_out, C)
            wk = wdw_ref[kh * KW + kw]                              # (1, C)
            acc_ref[...] = acc_ref[...] + patch * wk[None]          # f32 accumulate

    if fused:
        # Fused 1x1 pointwise conv: no HBM round-trip for the depthwise output.
        C = x_ref.shape[-1]
        dw = acc_ref[...].astype(wpw_ref.dtype).reshape(TH * W_out, C)
        o_ref[0] = jnp.dot(dw, wpw_ref[...],
                           preferred_element_type=jnp.float32).astype(o_ref.dtype)
    else:
        o_ref[0] = acc_ref[...].astype(o_ref.dtype)


# ----------------------------- Pallas wrappers --------------------------------


def dense_conv2d_nhwc(x, w_oihw, *, stride=1, padding=1, dilation=1):
    """groups=1 conv, NHWC in / NHWC out."""
    N, H, W, Cin = x.shape
    Cout, Cin_w, KH, KW = w_oihw.shape
    assert Cin_w == Cin
    H_out = _out_size(H, KH, stride, padding, dilation)
    W_out = _out_size(W, KW, stride, padding, dilation)
    TH = _choose_th(H_out, W_out)
    n_h = H_out // TH
    rows_in = (TH - 1) * stride + (KH - 1) * dilation + 1
    Wp = W + 2 * padding
    K = KH * KW * Cin
    Cout_pad = _round_up(Cout, 128)

    # (Cout, Cin, KH, KW) -> (KH*KW*Cin, Cout_pad); zero-pad Cout for lane density.
    w2 = jnp.transpose(w_oihw, (2, 3, 1, 0)).reshape(K, Cout).astype(x.dtype)
    if Cout_pad != Cout:
        w2 = jnp.pad(w2, ((0, 0), (0, Cout_pad - Cout)))

    kern = functools.partial(_dense_conv_kernel, KH=KH, KW=KW, H=H, W=W, PAD=padding,
                             stride=stride, dilation=dilation, TH=TH, W_out=W_out)
    y = pl.pallas_call(
        kern,
        out_shape=jax.ShapeDtypeStruct((N, H_out * W_out, Cout_pad), x.dtype),
        grid_spec=pltpu.PrefetchScalarGridSpec(
            num_scalar_prefetch=0,
            grid=(N, n_h),
            in_specs=[
                pl.BlockSpec((1, H, W, Cin), lambda n, h: (n, 0, 0, 0)),
                pl.BlockSpec((K, Cout_pad), lambda n, h: (0, 0)),
            ],
            out_specs=pl.BlockSpec((1, TH * W_out, Cout_pad), lambda n, h: (n, h, 0)),
            scratch_shapes=[
                pltpu.VMEM((rows_in, Wp, Cin), x.dtype),       # padded input band
                pltpu.VMEM((TH * W_out, K), x.dtype),          # im2col matrix
            ]),
        compiler_params=pltpu.CompilerParams(
            dimension_semantics=("parallel", "parallel")),
    )(x, w2)
    return y[:, :, :Cout].reshape(N, H_out, W_out, Cout)


def depthwise_conv2d_nhwc(x, w_dw_oihw, pw_w=None, *, stride=1, padding=1, dilation=1):
    """Depthwise conv (channel multiplier already folded into x / weights by the
    caller).  If pw_w (Cout, C, 1, 1) is given, the 1x1 pointwise conv is fused."""
    N, H, W, C = x.shape
    Cw, one, KH, KW = w_dw_oihw.shape
    assert Cw == C and one == 1
    H_out = _out_size(H, KH, stride, padding, dilation)
    W_out = _out_size(W, KW, stride, padding, dilation)
    TH = _choose_th(H_out, W_out)
    n_h = H_out // TH
    rows_in = (TH - 1) * stride + (KH - 1) * dilation + 1
    Wp = W + 2 * padding

    # (C, 1, KH, KW) -> (KH*KW, 1, C)
    wdw = jnp.transpose(w_dw_oihw, (2, 3, 1, 0)).reshape(KH * KW, 1, C).astype(x.dtype)

    fused = pw_w is not None
    in_specs = [
        pl.BlockSpec((1, H, W, C), lambda n, h: (n, 0, 0, 0)),
        pl.BlockSpec((KH * KW, 1, C), lambda n, h: (0, 0, 0)),
    ]
    inputs = [x, wdw]
    scratch = [pltpu.VMEM((rows_in, Wp, C), x.dtype),
               pltpu.VMEM((TH, W_out, C), jnp.float32)]
    if fused:
        Cout = pw_w.shape[0]
        Cout_pad = _round_up(Cout, 128)
        wpw = jnp.transpose(pw_w[:, :, 0, 0], (1, 0)).astype(x.dtype)   # (C, Cout)
        if Cout_pad != Cout:
            wpw = jnp.pad(wpw, ((0, 0), (0, Cout_pad - Cout)))
        in_specs.append(pl.BlockSpec((C, Cout_pad), lambda n, h: (0, 0)))
        inputs.append(wpw)
        out_shape = jax.ShapeDtypeStruct((N, H_out * W_out, Cout_pad), x.dtype)
        out_spec = pl.BlockSpec((1, TH * W_out, Cout_pad), lambda n, h: (n, h, 0))
    else:
        out_shape = jax.ShapeDtypeStruct((N, H_out, W_out, C), x.dtype)
        out_spec = pl.BlockSpec((1, TH, W_out, C), lambda n, h: (n, h, 0, 0))

    kern = functools.partial(_dw_conv_kernel, KH=KH, KW=KW, H=H, W=W, PAD=padding,
                             stride=stride, dilation=dilation, TH=TH, W_out=W_out,
                             fused=fused)
    y = pl.pallas_call(
        kern,
        out_shape=out_shape,
        grid_spec=pltpu.PrefetchScalarGridSpec(
            num_scalar_prefetch=0,
            grid=(N, n_h),
            in_specs=in_specs,
            out_specs=out_spec,
            scratch_shapes=scratch),
        compiler_params=pltpu.CompilerParams(
            dimension_semantics=("parallel", "parallel")),
    )(*inputs)
    if fused:
        y = y[:, :, :Cout].reshape(N, H_out, W_out, Cout)
    return y


# --------------------------- Module-equivalent class --------------------------


class WyConv2dPallas:
    """JAX/Pallas equivalent of the PyTorch WyConv2d module (NCHW in / NCHW out)."""

    def __init__(self, key, in_channels, out_channels, kernel_size=3, padding=1,
                 strides=1, dilation=1, ctype='vanila', bias=False):
        self.ctype = ctype
        self.padding = padding
        self.stride = strides
        self.dilation = dilation
        self.in_channels = in_channels

        groups = 1
        out = out_channels
        if ctype == 'depthwise':
            groups = in_channels
        elif ctype == 'depthwise_seperable':
            groups = in_channels
            out = in_channels
        self.groups = groups

        k1, k2, k3, k4 = jax.random.split(key, 4)
        fan_in = (in_channels // groups) * kernel_size * kernel_size
        bound = 1.0 / (fan_in ** 0.5)
        self.conv_w = jax.random.uniform(
            k1, (out, in_channels // groups, kernel_size, kernel_size),
            jnp.float32, -bound, bound)
        self.conv_b = (jax.random.uniform(k2, (out,), jnp.float32, -bound, bound)
                       if bias else None)
        self.pw_w = None
        self.pw_b = None
        if ctype == 'depthwise_seperable':
            bpw = 1.0 / (in_channels ** 0.5)
            self.pw_w = jax.random.uniform(
                k3, (out_channels, in_channels, 1, 1), jnp.float32, -bpw, bpw)
            self.pw_b = (jax.random.uniform(k4, (out_channels,), jnp.float32, -bpw, bpw)
                         if bias else None)

    def __call__(self, x_nchw):
        x = jnp.transpose(x_nchw, (0, 2, 3, 1))  # NCHW -> NHWC (boundary layout glue)

        if self.groups == 1:                                   # 'vanila'
            y = dense_conv2d_nhwc(x, self.conv_w, stride=self.stride,
                                  padding=self.padding, dilation=self.dilation)
            if self.conv_b is not None:
                y = y + self.conv_b

        elif self.ctype == 'depthwise_seperable':              # fused dw + 1x1
            y = depthwise_conv2d_nhwc(x, self.conv_w, self.pw_w, stride=self.stride,
                                      padding=self.padding, dilation=self.dilation)
            if self.conv_b is not None or self.pw_b is not None:
                # (dw + b_dw) @ Wpw + b_pw  ==  fused_out + (Wpw @ b_dw + b_pw)
                pw_mat = self.pw_w[:, :, 0, 0]
                b = jnp.zeros((pw_mat.shape[0],), y.dtype)
                if self.conv_b is not None:
                    b = b + pw_mat @ self.conv_b
                if self.pw_b is not None:
                    b = b + self.pw_b
                y = y + b

        else:                                                  # 'depthwise'
            out_ch = self.conv_w.shape[0]
            M = out_ch // self.in_channels                     # channel multiplier
            x_exp = jnp.repeat(x, M, axis=-1) if M > 1 else x  # PyTorch group-major order
            y = depthwise_conv2d_nhwc(x_exp, self.conv_w, stride=self.stride,
                                      padding=self.padding, dilation=self.dilation)
            if self.conv_b is not None:
                y = y + self.conv_b

        return jnp.transpose(y, (0, 3, 1, 2))  # NHWC -> NCHW


# ------------------------------ Pure-JAX reference ----------------------------


def _ref_forward(mod: WyConv2dPallas, x_nchw):
    y = jax.lax.conv_general_dilated(
        x_nchw, mod.conv_w, window_strides=(mod.stride, mod.stride),
        padding=((mod.padding, mod.padding), (mod.padding, mod.padding)),
        rhs_dilation=(mod.dilation, mod.dilation),
        dimension_numbers=('NCHW', 'OIHW', 'NCHW'),
        feature_group_count=mod.groups)
    if mod.conv_b is not None:
        y = y + mod.conv_b[None, :, None, None]
    if mod.ctype == 'depthwise_seperable':
        y = jax.lax.conv_general_dilated(
            y, mod.pw_w, window_strides=(1, 1), padding=((0, 0), (0, 0)),
            dimension_numbers=('NCHW', 'OIHW', 'NCHW'))
        if mod.pw_b is not None:
            y = y + mod.pw_b[None, :, None, None]
    return y


# ----------------------------------- main --------------------------------------


if __name__ == "__main__":
    key = jax.random.PRNGKey(0)
    kx, k1, k2, k3, k4, k5 = jax.random.split(key, 6)

    N, Cin, H, W = 2, 4, 16, 16
    Cout = 8
    x = jax.random.normal(kx, (N, Cin, H, W), jnp.float32)

    configs = [
        ("vanila_3x3", WyConv2dPallas(k1, Cin, Cout, ctype='vanila')),
        ("vanila_1x1", WyConv2dPallas(k2, Cin, Cout, kernel_size=1, padding=0,
                                      ctype='vanila')),
        ("depthwise", WyConv2dPallas(k3, Cin, Cin, ctype='depthwise')),
        ("depthwise_x2", WyConv2dPallas(k4, Cin, 2 * Cin, ctype='depthwise')),
        ("depthwise_seperable", WyConv2dPallas(k5, Cin, Cout,
                                               ctype='depthwise_seperable')),
    ]

    for name, mod in configs:
        out = jax.block_until_ready(mod(x))
        ref = jax.block_until_ready(_ref_forward(mod, x))
        assert out.shape == ref.shape, (name, out.shape, ref.shape)
        assert jnp.allclose(out, ref, atol=1e-4, rtol=1e-4), f"mismatch for ctype={name}"

    print("KERNEL_OK")
</pallas_src>

<mosaic_0001>
module attributes {stable_mosaic.version = 11 : i64} {
  func.func @_dense_conv_kernel(%arg0: i32, %arg1: i32, %arg2: memref<1x16x16x4xf32, #tpu.memory_space<vmem>>, %arg3: memref<36x128xf32, #tpu.memory_space<vmem>>, %arg4: memref<1x128x128xf32, #tpu.memory_space<vmem>>, %arg5: memref<10x18x4xf32, #tpu.memory_space<vmem>>, %arg6: memref<128x36xf32, #tpu.memory_space<vmem>>) attributes {dimension_semantics = [#tpu.dimension_semantics<parallel>, #tpu.dimension_semantics<parallel>], iteration_bounds = array<i64: 2, 2>, scalar_prefetch = 0 : i64, scratch_operands = 2 : i64, tpu.core_type = #tpu.core_type<tc>, window_params = [{transform_indices = @transform_0, window_bounds = array<i64: 1, 16, 16, 4>}, {pipeline_mode = #tpu.pipeline_mode<synchronous>, transform_indices = @transform_1, window_bounds = array<i64: 36, 128>}, {transform_indices = @transform_2, window_bounds = array<i64: 1, 128, 128>}]} {
    %c8_i32 = arith.constant 8 : i32
    %0 = arith.muli %arg1, %c8_i32 : i32
    %cst = arith.constant 0.000000e+00 : f32
    %1 = vector.broadcast %cst : f32 to vector<10x18x4xf32>
    %c0 = arith.constant 0 : index
    %c0_0 = arith.constant 0 : index
    %c0_1 = arith.constant 0 : index
    %2 = vector.load %arg5[%c0, %c0_0, %c0_1] : memref<10x18x4xf32, #tpu.memory_space<vmem>>, vector<10x18x4xf32>
    tpu.vector_store %arg5[%c0, %c0_0, %c0_1], %1 {strides = array<i32>} : memref<10x18x4xf32, #tpu.memory_space<vmem>>, vector<10x18x4xf32>,
    %c-1_i32 = arith.constant -1 : i32
    %3 = arith.addi %0, %c-1_i32 : i32
    %c0_i32 = arith.constant 0 : i32
    %4 = arith.cmpi sge, %3, %c0_i32 : i32
    %c16_i32 = arith.constant 16 : i32
    %5 = arith.cmpi slt, %3, %c16_i32 : i32
    %6 = arith.andi %4, %5 : i1
    %7 = arith.extui %6 : i1 to i32
    %c0_i32_2 = arith.constant 0 : i32
    %8 = arith.cmpi ne, %7, %c0_i32_2 : i32
    scf.if %8 {
      %c0_53 = arith.constant 0 : index
      %97 = arith.index_cast %3 : i32 to index
      %c0_54 = arith.constant 0 : index
      %c0_55 = arith.constant 0 : index
      %98 = vector.load %arg2[%c0_53, %97, %c0_54, %c0_55] : memref<1x16x16x4xf32, #tpu.memory_space<vmem>>, vector<1x1x16x4xf32>
      %99 = vector.shape_cast %98 : vector<1x1x16x4xf32> to vector<1x16x4xf32>
      %c0_56 = arith.constant 0 : index
      %c1 = arith.constant 1 : index
      %c0_57 = arith.constant 0 : index
      %100 = vector.load %arg5[%c0_56, %c1, %c0_57] : memref<10x18x4xf32, #tpu.memory_space<vmem>>, vector<1x16x4xf32>
      tpu.vector_store %arg5[%c0_56, %c1, %c0_57], %99 {strides = array<i32>} : memref<10x18x4xf32, #tpu.memory_space<vmem>>, vector<1x16x4xf32>,
    } else {
    }
    %c0_i32_3 = arith.constant 0 : i32
    %9 = arith.addi %0, %c0_i32_3 : i32
    %c0_i32_4 = arith.constant 0 : i32
    %10 = arith.cmpi sge, %9, %c0_i32_4 : i32
    %c16_i32_5 = arith.constant 16 : i32
    %11 = arith.cmpi slt, %9, %c16_i32_5 : i32
    %12 = arith.andi %10, %11 : i1
    %13 = arith.extui %12 : i1 to i32
    %c0_i32_6 = arith.constant 0 : i32
    %14 = arith.cmpi ne, %13, %c0_i32_6 : i32
    scf.if %14 {
      %c0_53 = arith.constant 0 : index
      %97 = arith.index_cast %9 : i32 to index
      %c0_54 = arith.constant 0 : index
      %c0_55 = arith.constant 0 : index
      %98 = vector.load %arg2[%c0_53, %97, %c0_54, %c0_55] : memref<1x16x16x4xf32, #tpu.memory_space<vmem>>, vector<1x1x16x4xf32>
      %99 = vector.shape_cast %98 : vector<1x1x16x4xf32> to vector<1x16x4xf32>
      %c1 = arith.constant 1 : index
      %c1_56 = arith.constant 1 : index
      %c0_57 = arith.constant 0 : index
      %100 = vector.load %arg5[%c1, %c1_56, %c0_57] : memref<10x18x4xf32, #tpu.memory_space<vmem>>, vector<1x16x4xf32>
      tpu.vector_store %arg5[%c1, %c1_56, %c0_57], %99 {strides = array<i32>} : memref<10x18x4xf32, #tpu.memory_space<vmem>>, vector<1x16x4xf32>,
    } else {
    }
    %c1_i32 = arith.constant 1 : i32
    %15 = arith.addi %0, %c1_i32 : i32
    %c0_i32_7 = arith.constant 0 : i32
    %16 = arith.cmpi sge, %15, %c0_i32_7 : i32
    %c16_i32_8 = arith.constant 16 : i32
    %17 = arith.cmpi slt, %15, %c16_i32_8 : i32
    %18 = arith.andi %16, %17 : i1
    %19 = arith.extui %18 : i1 to i32
    %c0_i32_9 = arith.constant 0 : i32
    %20 = arith.cmpi ne, %19, %c0_i32_9 : i32
    scf.if %20 {
      %c0_53 = arith.constant 0 : index
      %97 = arith.index_cast %15 : i32 to index
      %c0_54 = arith.constant 0 : index
      %c0_55 = arith.constant 0 : index
      %98 = vector.load %arg2[%c0_53, %97, %c0_54, %c0_55] : memref<1x16x16x4xf32, #tpu.memory_space<vmem>>, vector<1x1x16x4xf32>
      %99 = vector.shape_cast %98 : vector<1x1x16x4xf32> to vector<1x16x4xf32>
      %c2 = arith.constant 2 : index
      %c1 = arith.constant 1 : index
      %c0_56 = arith.constant 0 : index
      %100 = vector.load %arg5[%c2, %c1, %c0_56] : memref<10x18x4xf32, #tpu.memory_space<vmem>>, vector<1x16x4xf32>
      tpu.vector_store %arg5[%c2, %c1, %c0_56], %99 {strides = array<i32>} : memref<10x18x4xf32, #tpu.memory_space<vmem>>, vector<1x16x4xf32>,
    } else {
    }
    %c2_i32 = arith.constant 2 : i32
    %21 = arith.addi %0, %c2_i32 : i32
    %c0_i32_10 = arith.constant 0 : i32
    %22 = arith.cmpi sge, %21, %c0_i32_10 : i32
    %c16_i32_11 = arith.constant 16 : i32
    %23 = arith.cmpi slt, %21, %c16_i32_11 : i32
    %24 = arith.andi %22, %23 : i1
    %25 = arith.extui %24 : i1 to i32
    %c0_i32_12 = arith.constant 0 : i32
    %26 = arith.cmpi ne, %25, %c0_i32_12 : i32
    scf.if %26 {
      %c0_53 = arith.constant 0 : index
      %97 = arith.index_cast %21 : i32 to index
      %c0_54 = arith.constant 0 : index
      %c0_55 = arith.constant 0 : index
      %98 = vector.load %arg2[%c0_53, %97, %c0_54, %c0_55] : memref<1x16x16x4xf32, #tpu.memory_space<vmem>>, vector<1x1x16x4xf32>
      %99 = vector.shape_cast %98 : vector<1x1x16x4xf32> to vector<1x16x4xf32>
      %c3 = arith.constant 3 : index
      %c1 = arith.constant 1 : index
      %c0_56 = arith.constant 0 : index
      %100 = vector.load %arg5[%c3, %c1, %c0_56] : memref<10x18x4xf32, #tpu.memory_space<vmem>>, vector<1x16x4xf32>
      tpu.vector_store %arg5[%c3, %c1, %c0_56], %99 {strides = array<i32>} : memref<10x18x4xf32, #tpu.memory_space<vmem>>, vector<1x16x4xf32>,
    } else {
    }
    %c3_i32 = arith.constant 3 : i32
    %27 = arith.addi %0, %c3_i32 : i32
    %c0_i32_13 = arith.constant 0 : i32
    %28 = arith.cmpi sge, %27, %c0_i32_13 : i32
    %c16_i32_14 = arith.constant 16 : i32
    %29 = arith.cmpi slt, %27, %c16_i32_14 : i32
    %30 = arith.andi %28, %29 : i1
    %31 = arith.extui %30 : i1 to i32
    %c0_i32_15 = arith.constant 0 : i32
    %32 = arith.cmpi ne, %31, %c0_i32_15 : i32
    scf.if %32 {
      %c0_53 = arith.constant 0 : index
      %97 = arith.index_cast %27 : i32 to index
      %c0_54 = arith.constant 0 : index
      %c0_55 = arith.constant 0 : index
      %98 = vector.load %arg2[%c0_53, %97, %c0_54, %c0_55] : memref<1x16x16x4xf32, #tpu.memory_space<vmem>>, vector<1x1x16x4xf32>
      %99 = vector.shape_cast %98 : vector<1x1x16x4xf32> to vector<1x16x4xf32>
      %c4_56 = arith.constant 4 : index
      %c1 = arith.constant 1 : index
      %c0_57 = arith.constant 0 : index
      %100 = vector.load %arg5[%c4_56, %c1, %c0_57] : memref<10x18x4xf32, #tpu.memory_space<vmem>>, vector<1x16x4xf32>
      tpu.vector_store %arg5[%c4_56, %c1, %c0_57], %99 {strides = array<i32>} : memref<10x18x4xf32, #tpu.memory_space<vmem>>, vector<1x16x4xf32>,
    } else {
    }
    %c4_i32 = arith.constant 4 : i32
    %33 = arith.addi %0, %c4_i32 : i32
    %c0_i32_16 = arith.constant 0 : i32
    %34 = arith.cmpi sge, %33, %c0_i32_16 : i32
    %c16_i32_17 = arith.constant 16 : i32
    %35 = arith.cmpi slt, %33, %c16_i32_17 : i32
    %36 = arith.andi %34, %35 : i1
    %37 = arith.extui %36 : i1 to i32
    %c0_i32_18 = arith.constant 0 : i32
    %38 = arith.cmpi ne, %37, %c0_i32_18 : i32
    scf.if %38 {
      %c0_53 = arith.constant 0 : index
      %97 = arith.index_cast %33 : i32 to index
      %c0_54 = arith.constant 0 : index
      %c0_55 = arith.constant 0 : index
      %98 = vector.load %arg2[%c0_53, %97, %c0_54, %c0_55] : memref<1x16x16x4xf32, #tpu.memory_space<vmem>>, vector<1x1x16x4xf32>
      %99 = vector.shape_cast %98 : vector<1x1x16x4xf32> to vector<1x16x4xf32>
      %c5 = arith.constant 5 : index
      %c1 = arith.constant 1 : index
      %c0_56 = arith.constant 0 : index
      %100 = vector.load %arg5[%c5, %c1, %c0_56] : memref<10x18x4xf32, #tpu.memory_space<vmem>>, vector<1x16x4xf32>
      tpu.vector_store %arg5[%c5, %c1, %c0_56], %99 {strides = array<i32>} : memref<10x18x4xf32, #tpu.memory_space<vmem>>, vector<1x16x4xf32>,
    } else {
    }
    %c5_i32 = arith.constant 5 : i32
    %39 = arith.addi %0, %c5_i32 : i32
    %c0_i32_19 = arith.constant 0 : i32
    %40 = arith.cmpi sge, %39, %c0_i32_19 : i32
    %c16_i32_20 = arith.constant 16 : i32
    %41 = arith.cmpi slt, %39, %c16_i32_20 : i32
    %42 = arith.andi %40, %41 : i1
    %43 = arith.extui %42 : i1 to i32
    %c0_i32_21 = arith.constant 0 : i32
    %44 = arith.cmpi ne, %43, %c0_i32_21 : i32
    scf.if %44 {
      %c0_53 = arith.constant 0 : index
      %97 = arith.index_cast %39 : i32 to index
      %c0_54 = arith.constant 0 : index
      %c0_55 = arith.constant 0 : index
      %98 = vector.load %arg2[%c0_53, %97, %c0_54, %c0_55] : memref<1x16x16x4xf32, #tpu.memory_space<vmem>>, vector<1x1x16x4xf32>
      %99 = vector.shape_cast %98 : vector<1x1x16x4xf32> to vector<1x16x4xf32>
      %c6 = arith.constant 6 : index
      %c1 = arith.constant 1 : index
      %c0_56 = arith.constant 0 : index
      %100 = vector.load %arg5[%c6, %c1, %c0_56] : memref<10x18x4xf32, #tpu.memory_space<vmem>>, vector<1x16x4xf32>
      tpu.vector_store %arg5[%c6, %c1, %c0_56], %99 {strides = array<i32>} : memref<10x18x4xf32, #tpu.memory_space<vmem>>, vector<1x16x4xf32>,
    } else {
    }
    %c6_i32 = arith.constant 6 : i32
    %45 = arith.addi %0, %c6_i32 : i32
    %c0_i32_22 = arith.constant 0 : i32
    %46 = arith.cmpi sge, %45, %c0_i32_22 : i32
    %c16_i32_23 = arith.constant 16 : i32
    %47 = arith.cmpi slt, %45, %c16_i32_23 : i32
    %48 = arith.andi %46, %47 : i1
    %49 = arith.extui %48 : i1 to i32
    %c0_i32_24 = arith.constant 0 : i32
    %50 = arith.cmpi ne, %49, %c0_i32_24 : i32
    scf.if %50 {
      %c0_53 = arith.constant 0 : index
      %97 = arith.index_cast %45 : i32 to index
      %c0_54 = arith.constant 0 : index
      %c0_55 = arith.constant 0 : index
      %98 = vector.load %arg2[%c0_53, %97, %c0_54, %c0_55] : memref<1x16x16x4xf32, #tpu.memory_space<vmem>>, vector<1x1x16x4xf32>
      %99 = vector.shape_cast %98 : vector<1x1x16x4xf32> to vector<1x16x4xf32>
      %c7 = arith.constant 7 : index
      %c1 = arith.constant 1 : index
      %c0_56 = arith.constant 0 : index
      %100 = vector.load %arg5[%c7, %c1, %c0_56] : memref<10x18x4xf32, #tpu.memory_space<vmem>>, vector<1x16x4xf32>
      tpu.vector_store %arg5[%c7, %c1, %c0_56], %99 {strides = array<i32>} : memref<10x18x4xf32, #tpu.memory_space<vmem>>, vector<1x16x4xf32>,
    } else {
    }
    %c7_i32 = arith.constant 7 : i32
    %51 = arith.addi %0, %c7_i32 : i32
    %c0_i32_25 = arith.constant 0 : i32
    %52 = arith.cmpi sge, %51, %c0_i32_25 : i32
    %c16_i32_26 = arith.constant 16 : i32
    %53 = arith.cmpi slt, %51, %c16_i32_26 : i32
    %54 = arith.andi %52, %53 : i1
    %55 = arith.extui %54 : i1 to i32
    %c0_i32_27 = arith.constant 0 : i32
    %56 = arith.cmpi ne, %55, %c0_i32_27 : i32
    scf.if %56 {
      %c0_53 = arith.constant 0 : index
      %97 = arith.index_cast %51 : i32 to index
      %c0_54 = arith.constant 0 : index
      %c0_55 = arith.constant 0 : index
      %98 = vector.load %arg2[%c0_53, %97, %c0_54, %c0_55] : memref<1x16x16x4xf32, #tpu.memory_space<vmem>>, vector<1x1x16x4xf32>
      %99 = vector.shape_cast %98 : vector<1x1x16x4xf32> to vector<1x16x4xf32>
      %c8_56 = arith.constant 8 : index
      %c1 = arith.constant 1 : index
      %c0_57 = arith.constant 0 : index
      %100 = vector.load %arg5[%c8_56, %c1, %c0_57] : memref<10x18x4xf32, #tpu.memory_space<vmem>>, vector<1x16x4xf32>
      tpu.vector_store %arg5[%c8_56, %c1, %c0_57], %99 {strides = array<i32>} : memref<10x18x4xf32, #tpu.memory_space<vmem>>, vector<1x16x4xf32>,
    } else {
    }
    %c8_i32_28 = arith.constant 8 : i32
    %57 = arith.addi %0, %c8_i32_28 : i32
    %c0_i32_29 = arith.constant 0 : i32
    %58 = arith.cmpi sge, %57, %c0_i32_29 : i32
    %c16_i32_30 = arith.constant 16 : i32
    %59 = arith.cmpi slt, %57, %c16_i32_30 : i32
    %60 = arith.andi %58, %59 : i1
    %61 = arith.extui %60 : i1 to i32
    %c0_i32_31 = arith.constant 0 : i32
    %62 = arith.cmpi ne, %61, %c0_i32_31 : i32
    scf.if %62 {
      %c0_53 = arith.constant 0 : index
      %97 = arith.index_cast %57 : i32 to index
      %c0_54 = arith.constant 0 : index
      %c0_55 = arith.constant 0 : index
      %98 = vector.load %arg2[%c0_53, %97, %c0_54, %c0_55] : memref<1x16x16x4xf32, #tpu.memory_space<vmem>>, vector<1x1x16x4xf32>
      %99 = vector.shape_cast %98 : vector<1x1x16x4xf32> to vector<1x16x4xf32>
      %c9 = arith.constant 9 : index
      %c1 = arith.constant 1 : index
      %c0_56 = arith.constant 0 : index
      %100 = vector.load %arg5[%c9, %c1, %c0_56] : memref<10x18x4xf32, #tpu.memory_space<vmem>>, vector<1x16x4xf32>
      tpu.vector_store %arg5[%c9, %c1, %c0_56], %99 {strides = array<i32>} : memref<10x18x4xf32, #tpu.memory_space<vmem>>, vector<1x16x4xf32>,
    } else {
    }
    %c0_32 = arith.constant 0 : index
    %c0_33 = arith.constant 0 : index
    %c0_34 = arith.constant 0 : index
    %63 = vector.load %arg5[%c0_32, %c0_33, %c0_34] : memref<10x18x4xf32, #tpu.memory_space<vmem>>, vector<10x18x4xf32>
    %64 = vector.extract_strided_slice %63 {offsets = [0, 0, 0], sizes = [8, 16, 4], strides = [1, 1, 1]} : vector<10x18x4xf32> to vector<8x16x4xf32>
    %65 = vector.shape_cast %64 : vector<8x16x4xf32> to vector<128x4xf32>
    %c0_35 = arith.constant 0 : index
    %c0_36 = arith.constant 0 : index
    %66 = vector.load %arg6[%c0_35, %c0_36] : memref<128x36xf32, #tpu.memory_space<vmem>>, vector<128x4xf32>
    tpu.vector_store %arg6[%c0_35, %c0_36], %65 {strides = array<i32>} : memref<128x36xf32, #tpu.memory_space<vmem>>, vector<128x4xf32>,
    %67 = vector.extract_strided_slice %63 {offsets = [0, 1, 0], sizes = [8, 16, 4], strides = [1, 1, 1]} : vector<10x18x4xf32> to vector<8x16x4xf32>
    %68 = vector.shape_cast %67 : vector<8x16x4xf32> to vector<128x4xf32>
    %c0_37 = arith.constant 0 : index
    %c4 = arith.constant 4 : index
    %69 = vector.load %arg6[%c0_37, %c4] : memref<128x36xf32, #tpu.memory_space<vmem>>, vector<128x4xf32>
    tpu.vector_store %arg6[%c0_37, %c4], %68 {strides = array<i32>} : memref<128x36xf32, #tpu.memory_space<vmem>>, vector<128x4xf32>,
    %70 = vector.extract_strided_slice %63 {offsets = [0, 2, 0], sizes = [8, 16, 4], strides = [1, 1, 1]} : vector<10x18x4xf32> to vector<8x16x4xf32>
    %71 = vector.shape_cast %70 : vector<8x16x4xf32> to vector<128x4xf32>
    %c0_38 = arith.constant 0 : index
    %c8 = arith.constant 8 : index
    %72 = vector.load %arg6[%c0_38, %c8] : memref<128x36xf32, #tpu.memory_space<vmem>>, vector<128x4xf32>
    tpu.vector_store %arg6[%c0_38, %c8], %71 {strides = array<i32>} : memref<128x36xf32, #tpu.memory_space<vmem>>, vector<128x4xf32>,
    %73 = vector.extract_strided_slice %63 {offsets = [1, 0, 0], sizes = [8, 16, 4], strides = [1, 1, 1]} : vector<10x18x4xf32> to vector<8x16x4xf32>
    %74 = vector.shape_cast %73 : vector<8x16x4xf32> to vector<128x4xf32>
    %c0_39 = arith.constant 0 : index
    %c12 = arith.constant 12 : index
    %75 = vector.load %arg6[%c0_39, %c12] : memref<128x36xf32, #tpu.memory_space<vmem>>, vector<128x4xf32>
    tpu.vector_store %arg6[%c0_39, %c12], %74 {strides = array<i32>} : memref<128x36xf32, #tpu.memory_space<vmem>>, vector<128x4xf32>,
    %76 = vector.extract_strided_slice %63 {offsets = [1, 1, 0], sizes = [8, 16, 4], strides = [1, 1, 1]} : vector<10x18x4xf32> to vector<8x16x4xf32>
    %77 = vector.shape_cast %76 : vector<8x16x4xf32> to vector<128x4xf32>
    %c0_40 = arith.constant 0 : index
    %c16 = arith.constant 16 : index
    %78 = vector.load %arg6[%c0_40, %c16] : memref<128x36xf32, #tpu.memory_space<vmem>>, vector<128x4xf32>
    tpu.vector_store %arg6[%c0_40, %c16], %77 {strides = array<i32>} : memref<128x36xf32, #tpu.memory_space<vmem>>, vector<128x4xf32>,
    %79 = vector.extract_strided_slice %63 {offsets = [1, 2, 0], sizes = [8, 16, 4], strides = [1, 1, 1]} : vector<10x18x4xf32> to vector<8x16x4xf32>
    %80 = vector.shape_cast %79 : vector<8x16x4xf32> to vector<128x4xf32>
    %c0_41 = arith.constant 0 : index
    %c20 = arith.constant 20 : index
    %81 = vector.load %arg6[%c0_41, %c20] : memref<128x36xf32, #tpu.memory_space<vmem>>, vector<128x4xf32>
    tpu.vector_store %arg6[%c0_41, %c20], %80 {strides = array<i32>} : memref<128x36xf32, #tpu.memory_space<vmem>>, vector<128x4xf32>,
    %82 = vector.extract_strided_slice %63 {offsets = [2, 0, 0], sizes = [8, 16, 4], strides = [1, 1, 1]} : vector<10x18x4xf32> to vector<8x16x4xf32>
    %83 = vector.shape_cast %82 : vector<8x16x4xf32> to vector<128x4xf32>
    %c0_42 = arith.constant 0 : index
    %c24 = arith.constant 24 : index
    %84 = vector.load %arg6[%c0_42, %c24] : memref<128x36xf32, #tpu.memory_space<vmem>>, vector<128x4xf32>
    tpu.vector_store %arg6[%c0_42, %c24], %83 {strides = array<i32>} : memref<128x36xf32, #tpu.memory_space<vmem>>, vector<128x4xf32>,
    %85 = vector.extract_strided_slice %63 {offsets = [2, 1, 0], sizes = [8, 16, 4], strides = [1, 1, 1]} : vector<10x18x4xf32> to vector<8x16x4xf32>
    %86 = vector.shape_cast %85 : vector<8x16x4xf32> to vector<128x4xf32>
    %c0_43 = arith.constant 0 : index
    %c28 = arith.constant 28 : index
    %87 = vector.load %arg6[%c0_43, %c28] : memref<128x36xf32, #tpu.memory_space<vmem>>, vector<128x4xf32>
    tpu.vector_store %arg6[%c0_43, %c28], %86 {strides = array<i32>} : memref<128x36xf32, #tpu.memory_space<vmem>>, vector<128x4xf32>,
    %88 = vector.extract_strided_slice %63 {offsets = [2, 2, 0], sizes = [8, 16, 4], strides = [1, 1, 1]} : vector<10x18x4xf32> to vector<8x16x4xf32>
    %89 = vector.shape_cast %88 : vector<8x16x4xf32> to vector<128x4xf32>
    %c0_44 = arith.constant 0 : index
    %c32 = arith.constant 32 : index
    %90 = vector.load %arg6[%c0_44, %c32] : memref<128x36xf32, #tpu.memory_space<vmem>>, vector<128x4xf32>
    tpu.vector_store %arg6[%c0_44, %c32], %89 {strides = array<i32>} : memref<128x36xf32, #tpu.memory_space<vmem>>, vector<128x4xf32>,
    %c0_45 = arith.constant 0 : index
    %c0_46 = arith.constant 0 : index
    %91 = vector.load %arg6[%c0_45, %c0_46] : memref<128x36xf32, #tpu.memory_space<vmem>>, vector<128x36xf32>
    %c0_47 = arith.constant 0 : index
    %c0_48 = arith.constant 0 : index
    %92 = vector.load %arg3[%c0_47, %c0_48] : memref<36x128xf32, #tpu.memory_space<vmem>>, vector<36x128xf32>
    %cst_49 = arith.constant dense<0.000000e+00> : vector<128x128xf32>
    %93 = tpu.matmul %91, %92, %cst_49 {dimension_numbers = #tpu.dot_dimension_numbers<[1], [0], [0], [1], [0, 0, 1, 1], [], []>} : vector<128x36xf32>, vector<36x128xf32>, vector<128x128xf32> -> vector<128x128xf32>
    %c0_50 = arith.constant 0 : index
    %c0_51 = arith.constant 0 : index
    %c0_52 = arith.constant 0 : index
    %94 = vector.load %arg4[%c0_50, %c0_51, %c0_52] : memref<1x128x128xf32, #tpu.memory_space<vmem>>, vector<1x128x128xf32>
    %95 = vector.shape_cast %94 : vector<1x128x128xf32> to vector<128x128xf32>
    %96 = vector.shape_cast %93 : vector<128x128xf32> to vector<1x128x128xf32>
    tpu.vector_store %arg4[%c0_50, %c0_51, %c0_52], %96 {strides = array<i32>} : memref<1x128x128xf32, #tpu.memory_space<vmem>>, vector<1x128x128xf32>,
    return
  }
  func.func @transform_0(%arg0: i32, %arg1: i32) -> (i32, i32, i32, i32) {
    %c0_i32 = arith.constant 0 : i32
    %c0_i32_0 = arith.constant 0 : i32
    %c0_i32_1 = arith.constant 0 : i32
    %c0_i32_2 = arith.constant 0 : i32
    return %arg0, %c0_i32, %c0_i32_0, %c0_i32_1 : i32, i32, i32, i32
  }
  func.func @transform_1(%arg0: i32, %arg1: i32) -> (i32, i32) {
    %c0_i32 = arith.constant 0 : i32
    %c0_i32_0 = arith.constant 0 : i32
    %c0_i32_1 = arith.constant 0 : i32
    return %c0_i32, %c0_i32_0 : i32, i32
  }
  func.func @transform_2(%arg0: i32, %arg1: i32) -> (i32, i32, i32) {
    %c0_i32 = arith.constant 0 : i32
    %c0_i32_0 = arith.constant 0 : i32
    return %arg0, %arg1, %c0_i32 : i32, i32, i32
  }
}

</mosaic_0001>

<llo_original>
// kernel: tpu_custom_call.1
$region0: #{tpu_custom_call.1}
  #allocation0 [shape = 'u32[]', space=smem, size = 0x4, offset = 0x4, fixed_abs, tag = 'smem constant byte address 0x4 - core index']
  #allocation1 [shape = 'u32[144,128]{1,0:T(1,128)}', space=vmem, size = 0x12000, scoped, tag = 'internal scratch']
  #allocation2 [shape = 'f32[10,18,4]{2,1,0:T(8,128)}', space=vmem, size = 0x1e000, scoped, tag = 'scratch operand']
  #allocation3 [shape = 'f32[128,36]{1,0:T(8,128)}', space=vmem, size = 0x10000, scoped, tag = 'scratch operand']
  %s0 = inlined_call_operand.vmem [shape: f32[2,16,16,4], index: 0, kind: input, shape index: {}]
  %s1 = inlined_call_operand.vmem [shape: f32[36,128], index: 1, kind: input, shape index: {}]
  %s2 = inlined_call_operand.hbm [shape: f32[2,256,128], index: 2, kind: output, shape index: {}]
  %s3 = sld [smem:[#allocation0]]
  $region81: #{tpu_custom_call.1} parent=0
    _
  %s5 = ssub.s32 1, %s3
  %s6 = scalar_select 0, %s5, %s3
  $region1: #{tpu_custom_call.1} parent=0
    #allocation4 [shape = 'u8[131072]{0}', space=vmem, size = 0x20000, scoped, tag = 'output window, operand 0']
    #allocation5 [shape = 's32[2]{0}', space=sflag, size = 0x8, scoped, tag = 'scoped memory for tpu_custom_call.1']
    %7 = vsyncpa [#allocation5], 0
    %s8 = scalar_lea.sflag [#allocation5], 1
    %9 = vsyncpa %s8, 0
    loop: start=0, step=1, limit=6
    $region2: #{tpu_custom_call.1} parent=1 // loop_pre_header
      _
    $region3: #{tpu_custom_call.1} parent=1 // loop_header
      %s11 = sphi 0, %s15
      %p12 = scmp.ge.s32.totalorder %s11, 6
      %s18 = sphi 0, %s30
      %s19 = sphi 0, %s26
      %s20 = sphi 0, %s18
      %s21 = sphi 0, %s19
      %s22 = sphi 0, %s20
      %s23 = sphi 0, %s21
      %s33 = sphi 0, %s35
      %s36 = sphi 0, %s33
      %s37 = sphi 0, %s36
      %s53 = sphi 0, %s37
      %s57 = sphi 0, %s57
      %s59 = sphi 0, %s57
      %s60 = sphi 0, %s59
      %s74 = sphi 0, %s60
      %s82 = sphi 0, %s84
      %s85 = sphi 0, %s82
      %s86 = sphi 0, %s85
      %s102 = sphi 0, %s86
    $region4: #{tpu_custom_call.1} parent=1 // loop_header_branch
      %14 = sbr.rel (%p12) target = $region8
    $region5: #{tpu_custom_call.1} parent=1 // loop_body
      %s16 = ssub.s32 %s11, 1
      %s17 = ssub.s32 %s11, 2
      %s24 = sadd.s32 1, %s19
      %p25 = scmp.ge.s32.totalorder %s24, 2
      %s26 = scalar_select %p25, 0, %s24
      %s27 = sadd.s32 1, %s18
      %s28 = scalar_select %p25, %s27, %s18
      %p29 = scmp.ge.s32.totalorder %s28, 2
      %s30 = scalar_select %p29, 0, %s28
      %s31 = ssub.s32 %s18, %s30
      %p32 = scmp.eq.s32.totalorder %s31, 0
      %s34 = sadd.s32 %s33, 1
      %s35 = scalar_select %p32, %s33, %s34
      %p38 = pneg %p32
      %p39 = scmp.eq.s32.totalorder %s11, 3
      %p40 = por %p38, %p39
      %p41 = scmp.ne.s32.totalorder %s33, %s36
      %p42 = scmp.eq.s32.totalorder %s11, 0
      %p43 = por %p41, %p42
      %p44 = scmp.ne.s32.totalorder %s33, %s36
      %p45 = scmp.eq.s32.totalorder %s16, 3
      %p46 = por %p44, %p45
      %p47 = scmp.ne.s32.totalorder %s36, %s37
      %p48 = scmp.eq.s32.totalorder %s16, 0
      %p49 = por %p47, %p48
      %p50 = scmp.ne.s32.totalorder %s36, %s37
      %p51 = scmp.eq.s32.totalorder %s17, 3
      %p52 = por %p50, %p51
      %p54 = scmp.ne.s32.totalorder %s37, %s53
      %p55 = scmp.eq.s32.totalorder %s17, 0
      %p56 = por %p54, %p55
      %s58 = sadd.s32 %s57, 1
      %p61 = scmp.eq.s32.totalorder %s11, 3
      %p62 = scmp.ne.s32.totalorder %s57, %s59
      %p63 = scmp.eq.s32.totalorder %s11, 0
      %p64 = por %p62, %p63
      %p65 = scmp.ne.s32.totalorder %s57, %s59
      %p66 = scmp.eq.s32.totalorder %s16, 3
      %p67 = por %p65, %p66
      %p68 = scmp.ne.s32.totalorder %s59, %s60
      %p69 = scmp.eq.s32.totalorder %s16, 0
      %p70 = por %p68, %p69
      %p71 = scmp.ne.s32.totalorder %s59, %s60
      %p72 = scmp.eq.s32.totalorder %s17, 3
      %p73 = por %p71, %p72
      %p75 = scmp.ne.s32.totalorder %s60, %s74
      %p76 = scmp.eq.s32.totalorder %s17, 0
      %p77 = por %p75, %p76
      %s78 = ssub.s32 %s18, %s30
      %s79 = ssub.s32 %s19, %s26
      %s80 = sor.u32 %s78, %s79
      %p81 = scmp.eq.s32.totalorder %s80, 0
      %s83 = sadd.s32 %s82, 1
      %s84 = scalar_select %p81, %s82, %s83
      %p87 = pneg %p81
      %p88 = scmp.eq.s32.totalorder %s11, 3
      %p89 = por %p87, %p88
      %p90 = scmp.ne.s32.totalorder %s82, %s85
      %p91 = scmp.eq.s32.totalorder %s11, 0
      %p92 = por %p90, %p91
      %p93 = scmp.ne.s32.totalorder %s82, %s85
      %p94 = scmp.eq.s32.totalorder %s16, 3
      %p95 = por %p93, %p94
      %p96 = scmp.ne.s32.totalorder %s85, %s86
      %p97 = scmp.eq.s32.totalorder %s16, 0
      %p98 = por %p96, %p97
      %p99 = scmp.ne.s32.totalorder %s85, %s86
      %p100 = scmp.eq.s32.totalorder %s17, 3
      %p101 = por %p99, %p100
      %p103 = scmp.ne.s32.totalorder %s86, %s102
      %p104 = scmp.eq.s32.totalorder %s17, 0
      %p105 = por %p103, %p104
      %p106 = scmp.le.s32.totalorder 1, %s11
      %p107 = scmp.lt.s32.totalorder %s11, 5
      %p108 = pnand %p106, %p107
      %p109 = pneg %p108
      // Predicated region
      $region9: #{tpu_custom_call.1} parent=5 // pred_check
        _
      $region10: #{tpu_custom_call.1} parent=5 // pred_check_branch
        %111 = sbr.rel (%p108) target = $region12
      $region11: #{tpu_custom_call.1} parent=5 // pred_region
        %s112 = ssub.s32 %s11, 1
        // Predicated region
        $region13: #{tpu_custom_call.1} parent=11 // pred_check
          %p113 = pneg %p70
        $region14: #{tpu_custom_call.1} parent=11 // pred_check_branch
          %115 = sbr.rel (%p113) target = $region16
        $region15: #{tpu_custom_call.1} parent=11 // pred_region
          _
        $region16: #{tpu_custom_call.1} parent=11 // pred_fallthru
          _
      $region12: #{tpu_custom_call.1} parent=5 // pred_fallthru
        _
      %p116 = scmp.lt.s32.totalorder %s11, 4
      // Predicated region
      $region17: #{tpu_custom_call.1} parent=5 // pred_check
        %p117 = pneg %p116
      $region18: #{tpu_custom_call.1} parent=5 // pred_check_branch
        %119 = sbr.rel (%p117) target = $region20
      $region19: #{tpu_custom_call.1} parent=5 // pred_region
        // Predicated region
        $region21: #{tpu_custom_call.1} parent=19 // pred_check
          %p120 = pneg %p43
        $region22: #{tpu_custom_call.1} parent=19 // pred_check_branch
          %122 = sbr.rel (%p120) target = $region24
        $region23: #{tpu_custom_call.1} parent=19 // pred_region
          %p123 = scmp.lt.s32.totalorder %s18, 1
          %s124 = scalar_select %p123, %s18, 1
          %s125 = smul.addr %s124, 32
          %s126 = smul.addr %s125, 8
          %s127 = scalar_lea.vmem %s0, %s126
        $region24: #{tpu_custom_call.1} parent=19 // pred_fallthru
          _
      $region20: #{tpu_custom_call.1} parent=5 // pred_fallthru
        _
      %p128 = scmp.le.s32.totalorder 1, %s11
      %p129 = scmp.lt.s32.totalorder %s11, 5
      %p130 = pnand %p128, %p129
      %p131 = pneg %p130
      // Predicated region
      $region25: #{tpu_custom_call.1} parent=5 // pred_check
        _
      $region26: #{tpu_custom_call.1} parent=5 // pred_check_branch
        %133 = sbr.rel (%p130) target = $region28
      $region27: #{tpu_custom_call.1} parent=5 // pred_region
        %s134 = ssub.s32 %s11, 1
        %p135 = scmp.lt.s32.totalorder %s20, 1
        %s136 = scalar_select %p135, %s20, 1
        %s137 = smul.addr %s136, 32
        %s138 = smul.addr %s137, 8
        %s139 = scalar_lea.vmem %s0, %s138
        %p140 = pneg %p49
        %p141 = pneg %p46
        %p142 = pneg %p70
        %p143 = pneg %p67
        %p144 = pneg %p98
        %p145 = pneg %p95
        %s146 = sand.u32 %s85, 1
        %s147 = scalar_lea.sflag [#allocation5], %s146
        %s148 = sand.u32 %s85, 1
        %s149 = smul.addr %s148, 128
        %s150 = scalar_lea.vmem [#allocation4], %s149
        %p151 = scmp.lt.s32.totalorder %s20, 1
        %s152 = scalar_select %p151, %s20, 1
        %s153 = smul.addr %s152, 32
        %s154 = smul.addr %s153, 8
        %s155 = scalar_lea.vmem %s0, %s154
        %s156 = smul.u32 16, %s21
        %s157 = smul.u32 %s21, 8
        %vm158 = vcmask 31744
        %159 = vst.msk [vmem:[#allocation2] sm:$0xff] %vm158, 0.0
        %160 = vst.msk [vmem:[#allocation2 + $0x8] sm:$0xff] %vm158, 0.0
        %vm161 = vcmask 25600
        %162 = vst.msk [vmem:[#allocation2 + $0x10] sm:$0x3] %vm161, 0.0
        %163 = vst.msk [vmem:[#allocation2 + $0x18] sm:$0xff] %vm158, 0.0
        %164 = vst.msk [vmem:[#allocation2 + $0x20] sm:$0xff] %vm158, 0.0
        %165 = vst.msk [vmem:[#allocation2 + $0x28] sm:$0x3] %vm161, 0.0
        %166 = vst.msk [vmem:[#allocation2 + $0x30] sm:$0xff] %vm158, 0.0
        %167 = vst.msk [vmem:[#allocation2 + $0x38] sm:$0xff] %vm158, 0.0
        %168 = vst.msk [vmem:[#allocation2 + $0x40] sm:$0x3] %vm161, 0.0
        %169 = vst.msk [vmem:[#allocation2 + $0x48] sm:$0xff] %vm158, 0.0
        %170 = vst.msk [vmem:[#allocation2 + $0x50] sm:$0xff] %vm158, 0.0
        %171 = vst.msk [vmem:[#allocation2 + $0x58] sm:$0x3] %vm161, 0.0
        %172 = vst.msk [vmem:[#allocation2 + $0x60] sm:$0xff] %vm158, 0.0
        %173 = vst.msk [vmem:[#allocation2 + $0x68] sm:$0xff] %vm158, 0.0
        %174 = vst.msk [vmem:[#allocation2 + $0x70] sm:$0x3] %vm161, 0.0
        %175 = vst.msk [vmem:[#allocation2 + $0x78] sm:$0xff] %vm158, 0.0
        %176 = vst.msk [vmem:[#allocation2 + $0x80] sm:$0xff] %vm158, 0.0
        %177 = vst.msk [vmem:[#allocation2 + $0x88] sm:$0x3] %vm161, 0.0
        %178 = vst.msk [vmem:[#allocation2 + $0x90] sm:$0xff] %vm158, 0.0
        %179 = vst.msk [vmem:[#allocation2 + $0x98] sm:$0xff] %vm158, 0.0
        %180 = vst.msk [vmem:[#allocation2 + $0xa0] sm:$0x3] %vm161, 0.0
        %181 = vst.msk [vmem:[#allocation2 + $0xa8] sm:$0xff] %vm158, 0.0
        %182 = vst.msk [vmem:[#allocation2 + $0xb0] sm:$0xff] %vm158, 0.0
        %183 = vst.msk [vmem:[#allocation2 + $0xb8] sm:$0x3] %vm161, 0.0
        %184 = vst.msk [vmem:[#allocation2 + $0xc0] sm:$0xff] %vm158, 0.0
        %185 = vst.msk [vmem:[#allocation2 + $0xc8] sm:$0xff] %vm158, 0.0
        %186 = vst.msk [vmem:[#allocation2 + $0xd0] sm:$0x3] %vm161, 0.0
        %187 = vst.msk [vmem:[#allocation2 + $0xd8] sm:$0xff] %vm158, 0.0
        %188 = vst.msk [vmem:[#allocation2 + $0xe0] sm:$0xff] %vm158, 0.0
        %189 = vst.msk [vmem:[#allocation2 + $0xe8] sm:$0x3] %vm161, 0.0
        %s190 = sadd.s32 %s157, 4294967295
        %p191 = scmp.ge.s32.totalorder %s190, 0
        %p192 = scmp.lt.s32.totalorder %s190, 16
        %p193 = pnand %p191, %p192
        %p194 = pneg %p193
        // Predicated region
        $region29: #{tpu_custom_call.1} parent=27 // pred_check
          _
        $region30: #{tpu_custom_call.1} parent=27 // pred_check_branch
          %196 = sbr.rel (%p193) target = $region32
        $region31: #{tpu_custom_call.1} parent=27 // pred_region
          %s197 = smul.u32 %s190, 16
          %s198 = scalar_lea.vmem %s155, %s197
          %v199 = vld [vmem:[%s198] sm:$0xff]
          %v200 = vld [vmem:[%s198 + $0x8] sm:$0xff]
          %201 = vst.msk [vmem:[#allocation2 + $0x1] sm:$0xff] %vm158, %v199
          %202 = vst.msk [vmem:[#allocation2 + $0x9] sm:$0xff] %vm158, %v200
        $region32: #{tpu_custom_call.1} parent=27 // pred_fallthru
          _
        %p203 = scmp.ge.s32.totalorder %s157, 0
        %p204 = scmp.lt.s32.totalorder %s157, 16
        %p205 = pnand %p203, %p204
        %p206 = pneg %p205
        // Predicated region
        $region33: #{tpu_custom_call.1} parent=27 // pred_check
          _
        $region34: #{tpu_custom_call.1} parent=27 // pred_check_branch
          %208 = sbr.rel (%p205) target = $region36
        $region35: #{tpu_custom_call.1} parent=27 // pred_region
          %s209 = smul.u32 %s157, 16
          %s210 = scalar_lea.vmem %s155, %s209
          %v211 = vld [vmem:[%s210] sm:$0xff]
          %v212 = vld [vmem:[%s210 + $0x8] sm:$0xff]
          %s213 = scalar_lea.vmem [#allocation2], 24
          %214 = vst.msk [vmem:[%s213 + $0x1] sm:$0xff] %vm158, %v211
          %215 = vst.msk [vmem:[%s213 + $0x9] sm:$0xff] %vm158, %v212
        $region36: #{tpu_custom_call.1} parent=27 // pred_fallthru
          _
        %s216 = sadd.s32 %s157, 1
        %p217 = scmp.ge.s32.totalorder %s216, 0
        %p218 = scmp.lt.s32.totalorder %s216, 16
        %p219 = pnand %p217, %p218
        %p220 = pneg %p219
        // Predicated region
        $region37: #{tpu_custom_call.1} parent=27 // pred_check
          _
        $region38: #{tpu_custom_call.1} parent=27 // pred_check_branch
          %222 = sbr.rel (%p219) target = $region40
        $region39: #{tpu_custom_call.1} parent=27 // pred_region
          %s223 = smul.u32 %s216, 16
          %s224 = scalar_lea.vmem %s155, %s223
          %v225 = vld [vmem:[%s224] sm:$0xff]
          %v226 = vld [vmem:[%s224 + $0x8] sm:$0xff]
          %s227 = scalar_lea.vmem [#allocation2], 48
          %228 = vst.msk [vmem:[%s227 + $0x1] sm:$0xff] %vm158, %v225
          %229 = vst.msk [vmem:[%s227 + $0x9] sm:$0xff] %vm158, %v226
        $region40: #{tpu_custom_call.1} parent=27 // pred_fallthru
          _
        %s230 = sadd.s32 %s157, 2
        %p231 = scmp.ge.s32.totalorder %s230, 0
        %p232 = scmp.lt.s32.totalorder %s230, 16
        %p233 = pnand %p231, %p232
        %p234 = pneg %p233
        // Predicated region
        $region41: #{tpu_custom_call.1} parent=27 // pred_check
          _
        $region42: #{tpu_custom_call.1} parent=27 // pred_check_branch
          %236 = sbr.rel (%p233) target = $region44
        $region43: #{tpu_custom_call.1} parent=27 // pred_region
          %s237 = smul.u32 %s230, 16
          %s238 = scalar_lea.vmem %s155, %s237
          %v239 = vld [vmem:[%s238] sm:$0xff]
          %v240 = vld [vmem:[%s238 + $0x8] sm:$0xff]
          %s241 = scalar_lea.vmem [#allocation2], 72
          %242 = vst.msk [vmem:[%s241 + $0x1] sm:$0xff] %vm158, %v239
          %243 = vst.msk [vmem:[%s241 + $0x9] sm:$0xff] %vm158, %v240
        $region44: #{tpu_custom_call.1} parent=27 // pred_fallthru
          _
        %s244 = sadd.s32 %s157, 3
        %p245 = scmp.ge.s32.totalorder %s244, 0
        %p246 = scmp.lt.s32.totalorder %s244, 16
        %p247 = pnand %p245, %p246
        %p248 = pneg %p247
        // Predicated region
        $region45: #{tpu_custom_call.1} parent=27 // pred_check
          _
        $region46: #{tpu_custom_call.1} parent=27 // pred_check_branch
          %250 = sbr.rel (%p247) target = $region48
        $region47: #{tpu_custom_call.1} parent=27 // pred_region
          %s251 = smul.u32 %s244, 16
          %s252 = scalar_lea.vmem %s155, %s251
          %v253 = vld [vmem:[%s252] sm:$0xff]
          %v254 = vld [vmem:[%s252 + $0x8] sm:$0xff]
          %s255 = scalar_lea.vmem [#allocation2], 96
          %256 = vst.msk [vmem:[%s255 + $0x1] sm:$0xff] %vm158, %v253
          %257 = vst.msk [vmem:[%s255 + $0x9] sm:$0xff] %vm158, %v254
        $region48: #{tpu_custom_call.1} parent=27 // pred_fallthru
          _
        %s258 = sadd.s32 %s157, 4
        %p259 = scmp.ge.s32.totalorder %s258, 0
        %p260 = scmp.lt.s32.totalorder %s258, 16
        %p261 = pnand %p259, %p260
        %p262 = pneg %p261
        // Predicated region
        $region49: #{tpu_custom_call.1} parent=27 // pred_check
          _
        $region50: #{tpu_custom_call.1} parent=27 // pred_check_branch
          %264 = sbr.rel (%p261) target = $region52
        $region51: #{tpu_custom_call.1} parent=27 // pred_region
          %s265 = smul.u32 %s258, 16
          %s266 = scalar_lea.vmem %s155, %s265
          %v267 = vld [vmem:[%s266] sm:$0xff]
          %v268 = vld [vmem:[%s266 + $0x8] sm:$0xff]
          %s269 = scalar_lea.vmem [#allocation2], 120
          %270 = vst.msk [vmem:[%s269 + $0x1] sm:$0xff] %vm158, %v267
          %271 = vst.msk [vmem:[%s269 + $0x9] sm:$0xff] %vm158, %v268
        $region52: #{tpu_custom_call.1} parent=27 // pred_fallthru
          _
        %s272 = sadd.s32 %s157, 5
        %p273 = scmp.ge.s32.totalorder %s272, 0
        %p274 = scmp.lt.s32.totalorder %s272, 16
        %p275 = pnand %p273, %p274
        %p276 = pneg %p275
        // Predicated region
        $region53: #{tpu_custom_call.1} parent=27 // pred_check
          _
        $region54: #{tpu_custom_call.1} parent=27 // pred_check_branch
          %278 = sbr.rel (%p275) target = $region56
        $region55: #{tpu_custom_call.1} parent=27 // pred_region
          %s279 = smul.u32 %s272, 16
          %s280 = scalar_lea.vmem %s155, %s279
          %v281 = vld [vmem:[%s280] sm:$0xff]
          %v282 = vld [vmem:[%s280 + $0x8] sm:$0xff]
          %s283 = scalar_lea.vmem [#allocation2], 144
          %284 = vst.msk [vmem:[%s283 + $0x1] sm:$0xff] %vm158, %v281
          %285 = vst.msk [vmem:[%s283 + $0x9] sm:$0xff] %vm158, %v282
        $region56: #{tpu_custom_call.1} parent=27 // pred_fallthru
          _
        %s286 = sadd.s32 %s157, 6
        %p287 = scmp.ge.s32.totalorder %s286, 0
        %p288 = scmp.lt.s32.totalorder %s286, 16
        %p289 = pnand %p287, %p288
        %p290 = pneg %p289
        // Predicated region
        $region57: #{tpu_custom_call.1} parent=27 // pred_check
          _
        $region58: #{tpu_custom_call.1} parent=27 // pred_check_branch
          %292 = sbr.rel (%p289) target = $region60
        $region59: #{tpu_custom_call.1} parent=27 // pred_region
          %s293 = smul.u32 %s286, 16
          %s294 = scalar_lea.vmem %s155, %s293
          %v295 = vld [vmem:[%s294] sm:$0xff]
          %v296 = vld [vmem:[%s294 + $0x8] sm:$0xff]
          %s297 = scalar_lea.vmem [#allocation2], 168
          %298 = vst.msk [vmem:[%s297 + $0x1] sm:$0xff] %vm158, %v295
          %299 = vst.msk [vmem:[%s297 + $0x9] sm:$0xff] %vm158, %v296
        $region60: #{tpu_custom_call.1} parent=27 // pred_fallthru
          _
        %s300 = sadd.s32 %s157, 7
        %p301 = scmp.ge.s32.totalorder %s300, 0
        %p302 = scmp.lt.s32.totalorder %s300, 16
        %p303 = pnand %p301, %p302
        %p304 = pneg %p303
        // Predicated region
        $region61: #{tpu_custom_call.1} parent=27 // pred_check
          _
        $region62: #{tpu_custom_call.1} parent=27 // pred_check_branch
          %306 = sbr.rel (%p303) target = $region64
        $region63: #{tpu_custom_call.1} parent=27 // pred_region
          %s307 = smul.u32 %s300, 16
          %s308 = scalar_lea.vmem %s155, %s307
          %v309 = vld [vmem:[%s308] sm:$0xff]
          %v310 = vld [vmem:[%s308 + $0x8] sm:$0xff]
          %s311 = scalar_lea.vmem [#allocation2], 192
          %312 = vst.msk [vmem:[%s311 + $0x1] sm:$0xff] %vm158, %v309
          %313 = vst.msk [vmem:[%s311 + $0x9] sm:$0xff] %vm158, %v310
        $region64: #{tpu_custom_call.1} parent=27 // pred_fallthru
          _
        %s314 = sadd.s32 %s157, 8
        %p315 = scmp.ge.s32.totalorder %s314, 0
        %p316 = scmp.lt.s32.totalorder %s314, 16
        %p317 = pnand %p315, %p316
        %p318 = pneg %p317
        // Predicated region
        $region65: #{tpu_custom_call.1} parent=27 // pred_check
          _
        $region66: #{tpu_custom_call.1} parent=27 // pred_check_branch
          %320 = sbr.rel (%p317) target = $region68
        $region67: #{tpu_custom_call.1} parent=27 // pred_region
          %s321 = smul.u32 %s314, 16
          %s322 = scalar_lea.vmem %s155, %s321
          %v323 = vld [vmem:[%s322] sm:$0xff]
          %v324 = vld [vmem:[%s322 + $0x8] sm:$0xff]
          %s325 = scalar_lea.vmem [#allocation2], 216
          %326 = vst.msk [vmem:[%s325 + $0x1] sm:$0xff] %vm158, %v323
          %327 = vst.msk [vmem:[%s325 + $0x9] sm:$0xff] %vm158, %v324
        $region68: #{tpu_custom_call.1} parent=27 // pred_fallthru
          _
        %v328 = vld [vmem:[#allocation2] sm:$0xff]
        %v329 = vld [vmem:[#allocation2 + $0x8] sm:$0xff]
        %v330 = vld [vmem:[#allocation2 + $0x10] sm:$0x3]
        %v331 = vld [vmem:[#allocation2 + $0x18] sm:$0xff]
        %v332 = vld [vmem:[#allocation2 + $0x20] sm:$0xff]
        %v333 = vld [vmem:[#allocation2 + $0x28] sm:$0x3]
        %v334 = vld [vmem:[#allocation2 + $0x30] sm:$0xff]
        %v335 = vld [vmem:[#allocation2 + $0x38] sm:$0xff]
        %v336 = vld [vmem:[#allocation2 + $0x40] sm:$0x3]
        %v337 = vld [vmem:[#allocation2 + $0x48] sm:$0xff]
        %v338 = vld [vmem:[#allocation2 + $0x50] sm:$0xff]
        %v339 = vld [vmem:[#allocation2 + $0x58] sm:$0x3]
        %v340 = vld [vmem:[#allocation2 + $0x60] sm:$0xff]
        %v341 = vld [vmem:[#allocation2 + $0x68] sm:$0xff]
        %v342 = vld [vmem:[#allocation2 + $0x70] sm:$0x3]
        %v343 = vld [vmem:[#allocation2 + $0x78] sm:$0xff]
        %v344 = vld [vmem:[#allocation2 + $0x80] sm:$0xff]
        %v345 = vld [vmem:[#allocation2 + $0x88] sm:$0x3]
        %v346 = vld [vmem:[#allocation2 + $0x90] sm:$0xff]
        %v347 = vld [vmem:[#allocation2 + $0x98] sm:$0xff]
        %v348 = vld [vmem:[#allocation2 + $0xa0] sm:$0x3]
        %v349 = vld [vmem:[#allocation2 + $0xa8] sm:$0xff]
        %v350 = vld [vmem:[#allocation2 + $0xb0] sm:$0xff]
        %v351 = vld [vmem:[#allocation2 + $0xb8] sm:$0x3]
        %v352 = vld [vmem:[#allocation2 + $0xc0] sm:$0xff]
        %v353 = vld [vmem:[#allocation2 + $0xc8] sm:$0xff]
        %v354 = vld [vmem:[#allocation2 + $0xd0] sm:$0x3]
        %v355 = vld [vmem:[#allocation2 + $0xd8] sm:$0xff]
        %v356 = vld [vmem:[#allocation2 + $0xe0] sm:$0xff]
        %v357 = vld [vmem:[#allocation2 + $0xe8] sm:$0x3]
        %358 = vst.msk [vmem:[#allocation3] sm:$0xff] %vm158, %v328
        %359 = vst.msk [vmem:[#allocation3 + $0x8] sm:$0xff] %vm158, %v329
        %360 = vst.msk [vmem:[#allocation3 + $0x10] sm:$0xff] %vm158, %v331
        %361 = vst.msk [vmem:[#allocation3 + $0x18] sm:$0xff] %vm158, %v332
        %362 = vst.msk [vmem:[#allocation3 + $0x20] sm:$0xff] %vm158, %v334
        %363 = vst.msk [vmem:[#allocation3 + $0x28] sm:$0xff] %vm158, %v335
        %364 = vst.msk [vmem:[#allocation3 + $0x30] sm:$0xff] %vm158, %v337
        %365 = vst.msk [vmem:[#allocation3 + $0x38] sm:$0xff] %vm158, %v338
        %366 = vst.msk [vmem:[#allocation3 + $0x40] sm:$0xff] %vm158, %v340
        %367 = vst.msk [vmem:[#allocation3 + $0x48] sm:$0xff] %vm158, %v341
        %368 = vst.msk [vmem:[#allocation3 + $0x50] sm:$0xff] %vm158, %v343
        %369 = vst.msk [vmem:[#allocation3 + $0x58] sm:$0xff] %vm158, %v344
        %370 = vst.msk [vmem:[#allocation3 + $0x60] sm:$0xff] %vm158, %v346
        %371 = vst.msk [vmem:[#allocation3 + $0x68] sm:$0xff] %vm158, %v347
        %372 = vst.msk [vmem:[#allocation3 + $0x70] sm:$0xff] %vm158, %v349
        %373 = vst.msk [vmem:[#allocation3 + $0x78] sm:$0xff] %vm158, %v350
        %vm398 = vcmask 1046528
        %v399 = vrot.slane %v328, 1
        %v400 = vrot.slane %v329, 1
        %v401 = vsel %vm398, %v399, %v400
        %v402 = vrot.slane %v330, 1
        %v403 = vsel %vm398, %v400, %v402
        %v404 = vrot.slane %v331, 1
        %v405 = vrot.slane %v332, 1
        %v406 = vsel %vm398, %v404, %v405
        %v407 = vrot.slane %v333, 1
        %v408 = vsel %vm398, %v405, %v407
        %v409 = vrot.slane %v334, 1
        %v410 = vrot.slane %v335, 1
        %v411 = vsel %vm398, %v409, %v410
        %v412 = vrot.slane %v336, 1
        %v413 = vsel %vm398, %v410, %v412
        %v414 = vrot.slane %v337, 1
        %v415 = vrot.slane %v338, 1
        %v416 = vsel %vm398, %v414, %v415
        %v417 = vrot.slane %v339, 1
        %v418 = vsel %vm398, %v415, %v417
        %v419 = vrot.slane %v340, 1
        %v420 = vrot.slane %v341, 1
        %v421 = vsel %vm398, %v419, %v420
        %v422 = vrot.slane %v342, 1
        %v423 = vsel %vm398, %v420, %v422
        %v424 = vrot.slane %v343, 1
        %v425 = vrot.slane %v344, 1
        %v426 = vsel %vm398, %v424, %v425
        %v427 = vrot.slane %v345, 1
        %v428 = vsel %vm398, %v425, %v427
        %v429 = vrot.slane %v346, 1
        %v430 = vrot.slane %v347, 1
        %v431 = vsel %vm398, %v429, %v430
        %v432 = vrot.slane %v348, 1
        %v433 = vsel %vm398, %v430, %v432
        %v434 = vrot.slane %v349, 1
        %v435 = vrot.slane %v350, 1
        %v436 = vsel %vm398, %v434, %v435
        %v437 = vrot.slane %v351, 1
        %v438 = vsel %vm398, %v435, %v437
        %439 = vrot.lane.b32.xlu0 %v401, 4
        %v440 = vpop.permute.xlu0 %439
        %441 = vrot.lane.b32.xlu0 %v403, 4
        %v442 = vpop.permute.xlu0 %441
        %443 = vrot.lane.b32.xlu0 %v406, 4
        %v444 = vpop.permute.xlu0 %443
        %445 = vrot.lane.b32.xlu0 %v408, 4
        %v446 = vpop.permute.xlu0 %445
        %447 = vrot.lane.b32.xlu0 %v411, 4
        %v448 = vpop.permute.xlu0 %447
        %449 = vrot.lane.b32.xlu0 %v413, 4
        %v450 = vpop.permute.xlu0 %449
        %451 = vrot.lane.b32.xlu0 %v416, 4
        %v452 = vpop.permute.xlu0 %451
        %453 = vrot.lane.b32.xlu0 %v418, 4
        %v454 = vpop.permute.xlu0 %453
        %455 = vrot.lane.b32.xlu0 %v421, 4
        %v456 = vpop.permute.xlu0 %455
        %457 = vrot.lane.b32.xlu0 %v423, 4
        %v458 = vpop.permute.xlu0 %457
        %459 = vrot.lane.b32.xlu0 %v426, 4
        %v460 = vpop.permute.xlu0 %459
        %461 = vrot.lane.b32.xlu0 %v428, 4
        %v462 = vpop.permute.xlu0 %461
        %463 = vrot.lane.b32.xlu0 %v431, 4
        %v464 = vpop.permute.xlu0 %463
        %465 = vrot.lane.b32.xlu0 %v433, 4
        %v466 = vpop.permute.xlu0 %465
        %467 = vrot.lane.b32.xlu0 %v436, 4
        %v468 = vpop.permute.xlu0 %467
        %469 = vrot.lane.b32.xlu0 %v438, 4
        %v470 = vpop.permute.xlu0 %469
        %vm487 = vcmask 64544
        %488 = vst.msk [vmem:[#allocation3] sm:$0xff] %vm487, %v440
        %489 = vst.msk [vmem:[#allocation3 + $0x8] sm:$0xff] %vm487, %v442
        %490 = vst.msk [vmem:[#allocation3 + $0x10] sm:$0xff] %vm487, %v444
        %491 = vst.msk [vmem:[#allocation3 + $0x18] sm:$0xff] %vm487, %v446
        %492 = vst.msk [vmem:[#allocation3 + $0x20] sm:$0xff] %vm487, %v448
        %493 = vst.msk [vmem:[#allocation3 + $0x28] sm:$0xff] %vm487, %v450
        %494 = vst.msk [vmem:[#allocation3 + $0x30] sm:$0xff] %vm487, %v452
        %495 = vst.msk [vmem:[#allocation3 + $0x38] sm:$0xff] %vm487, %v454
        %496 = vst.msk [vmem:[#allocation3 + $0x40] sm:$0xff] %vm487, %v456
        %497 = vst.msk [vmem:[#allocation3 + $0x48] sm:$0xff] %vm487, %v458
        %498 = vst.msk [vmem:[#allocation3 + $0x50] sm:$0xff] %vm487, %v460
        %499 = vst.msk [vmem:[#allocation3 + $0x58] sm:$0xff] %vm487, %v462
        %500 = vst.msk [vmem:[#allocation3 + $0x60] sm:$0xff] %vm487, %v464
        %501 = vst.msk [vmem:[#allocation3 + $0x68] sm:$0xff] %vm487, %v466
        %502 = vst.msk [vmem:[#allocation3 + $0x70] sm:$0xff] %vm487, %v468
        %503 = vst.msk [vmem:[#allocation3 + $0x78] sm:$0xff] %vm487, %v470
        %vm504 = vcmask 1045504
        %v505 = vrot.slane %v328, 2
        %v506 = vrot.slane %v329, 2
        %v507 = vsel %vm504, %v505, %v506
        %v508 = vrot.slane %v330, 2
        %v509 = vsel %vm504, %v506, %v508
        %v510 = vrot.slane %v331, 2
        %v511 = vrot.slane %v332, 2
        %v512 = vsel %vm504, %v510, %v511
        %v513 = vrot.slane %v333, 2
        %v514 = vsel %vm504, %v511, %v513
        %v515 = vrot.slane %v334, 2
        %v516 = vrot.slane %v335, 2
        %v517 = vsel %vm504, %v515, %v516
        %v518 = vrot.slane %v336, 2
        %v519 = vsel %vm504, %v516, %v518
        %v520 = vrot.slane %v337, 2
        %v521 = vrot.slane %v338, 2
        %v522 = vsel %vm504, %v520, %v521
        %v523 = vrot.slane %v339, 2
        %v524 = vsel %vm504, %v521, %v523
        %v525 = vrot.slane %v340, 2
        %v526 = vrot.slane %v341, 2
        %v527 = vsel %vm504, %v525, %v526
        %v528 = vrot.slane %v342, 2
        %v529 = vsel %vm504, %v526, %v528
        %v530 = vrot.slane %v343, 2
        %v531 = vrot.slane %v344, 2
        %v532 = vsel %vm504, %v530, %v531
        %v533 = vrot.slane %v345, 2
        %v534 = vsel %vm504, %v531, %v533
        %v535 = vrot.slane %v346, 2
        %v536 = vrot.slane %v347, 2
        %v537 = vsel %vm504, %v535, %v536
        %v538 = vrot.slane %v348, 2
        %v539 = vsel %vm504, %v536, %v538
        %v540 = vrot.slane %v349, 2
        %v541 = vrot.slane %v350, 2
        %v542 = vsel %vm504, %v540, %v541
        %v543 = vrot.slane %v351, 2
        %v544 = vsel %vm504, %v541, %v543
        %545 = vrot.lane.b32.xlu0 %v507, 8
        %v546 = vpop.permute.xlu0 %545
        %547 = vrot.lane.b32.xlu0 %v509, 8
        %v548 = vpop.permute.xlu0 %547
        %549 = vrot.lane.b32.xlu0 %v512, 8
        %v550 = vpop.permute.xlu0 %549
        %551 = vrot.lane.b32.xlu0 %v514, 8
        %v552 = vpop.permute.xlu0 %551
        %553 = vrot.lane.b32.xlu0 %v517, 8
        %v554 = vpop.permute.xlu0 %553
        %555 = vrot.lane.b32.xlu0 %v519, 8
        %v556 = vpop.permute.xlu0 %555
        %557 = vrot.lane.b32.xlu0 %v522, 8
        %v558 = vpop.permute.xlu0 %557
        %559 = vrot.lane.b32.xlu0 %v524, 8
        %v560 = vpop.permute.xlu0 %559
        %561 = vrot.lane.b32.xlu0 %v527, 8
        %v562 = vpop.permute.xlu0 %561
        %563 = vrot.lane.b32.xlu0 %v529, 8
        %v564 = vpop.permute.xlu0 %563
        %565 = vrot.lane.b32.xlu0 %v532, 8
        %v566 = vpop.permute.xlu0 %565
        %567 = vrot.lane.b32.xlu0 %v534, 8
        %v568 = vpop.permute.xlu0 %567
        %569 = vrot.lane.b32.xlu0 %v537, 8
        %v570 = vpop.permute.xlu0 %569
        %571 = vrot.lane.b32.xlu0 %v539, 8
        %v572 = vpop.permute.xlu0 %571
        %573 = vrot.lane.b32.xlu0 %v542, 8
        %v574 = vpop.permute.xlu0 %573
        %575 = vrot.lane.b32.xlu0 %v544, 8
        %v576 = vpop.permute.xlu0 %575
        %vm593 = vcmask 97344
        %594 = vst.msk [vmem:[#allocation3] sm:$0xff] %vm593, %v546
        %595 = vst.msk [vmem:[#allocation3 + $0x8] sm:$0xff] %vm593, %v548
        %596 = vst.msk [vmem:[#allocation3 + $0x10] sm:$0xff] %vm593, %v550
        %597 = vst.msk [vmem:[#allocation3 + $0x18] sm:$0xff] %vm593, %v552
        %598 = vst.msk [vmem:[#allocation3 + $0x20] sm:$0xff] %vm593, %v554
        %599 = vst.msk [vmem:[#allocation3 + $0x28] sm:$0xff] %vm593, %v556
        %600 = vst.msk [vmem:[#allocation3 + $0x30] sm:$0xff] %vm593, %v558
        %601 = vst.msk [vmem:[#allocation3 + $0x38] sm:$0xff] %vm593, %v560
        %602 = vst.msk [vmem:[#allocation3 + $0x40] sm:$0xff] %vm593, %v562
        %603 = vst.msk [vmem:[#allocation3 + $0x48] sm:$0xff] %vm593, %v564
        %604 = vst.msk [vmem:[#allocation3 + $0x50] sm:$0xff] %vm593, %v566
        %605 = vst.msk [vmem:[#allocation3 + $0x58] sm:$0xff] %vm593, %v568
        %606 = vst.msk [vmem:[#allocation3 + $0x60] sm:$0xff] %vm593, %v570
        %607 = vst.msk [vmem:[#allocation3 + $0x68] sm:$0xff] %vm593, %v572
        %608 = vst.msk [vmem:[#allocation3 + $0x70] sm:$0xff] %vm593, %v574
        %609 = vst.msk [vmem:[#allocation3 + $0x78] sm:$0xff] %vm593, %v576
        %612 = vrot.lane.b32.xlu0 %v331, 12
        %v613 = vpop.permute.xlu0 %612
        %614 = vrot.lane.b32.xlu0 %v332, 12
        %v615 = vpop.permute.xlu0 %614
        %616 = vrot.lane.b32.xlu0 %v334, 12
        %v617 = vpop.permute.xlu0 %616
        %618 = vrot.lane.b32.xlu0 %v335, 12
        %v619 = vpop.permute.xlu0 %618
        %620 = vrot.lane.b32.xlu0 %v337, 12
        %v621 = vpop.permute.xlu0 %620
        %622 = vrot.lane.b32.xlu0 %v338, 12
        %v623 = vpop.permute.xlu0 %622
        %624 = vrot.lane.b32.xlu0 %v340, 12
        %v625 = vpop.permute.xlu0 %624
        %626 = vrot.lane.b32.xlu0 %v341, 12
        %v627 = vpop.permute.xlu0 %626
        %628 = vrot.lane.b32.xlu0 %v343, 12
        %v629 = vpop.permute.xlu0 %628
        %630 = vrot.lane.b32.xlu0 %v344, 12
        %v631 = vpop.permute.xlu0 %630
        %632 = vrot.lane.b32.xlu0 %v346, 12
        %v633 = vpop.permute.xlu0 %632
        %634 = vrot.lane.b32.xlu0 %v347, 12
        %v635 = vpop.permute.xlu0 %634
        %636 = vrot.lane.b32.xlu0 %v349, 12
        %v637 = vpop.permute.xlu0 %636
        %638 = vrot.lane.b32.xlu0 %v350, 12
        %v639 = vpop.permute.xlu0 %638
        %640 = vrot.lane.b32.xlu0 %v352, 12
        %v641 = vpop.permute.xlu0 %640
        %642 = vrot.lane.b32.xlu0 %v353, 12
        %v643 = vpop.permute.xlu0 %642
        %vm660 = vcmask 130144
        %661 = vst.msk [vmem:[#allocation3] sm:$0xff] %vm660, %v613
        %662 = vst.msk [vmem:[#allocation3 + $0x8] sm:$0xff] %vm660, %v615
        %663 = vst.msk [vmem:[#allocation3 + $0x10] sm:$0xff] %vm660, %v617
        %664 = vst.msk [vmem:[#allocation3 + $0x18] sm:$0xff] %vm660, %v619
        %665 = vst.msk [vmem:[#allocation3 + $0x20] sm:$0xff] %vm660, %v621
        %666 = vst.msk [vmem:[#allocation3 + $0x28] sm:$0xff] %vm660, %v623
        %667 = vst.msk [vmem:[#allocation3 + $0x30] sm:$0xff] %vm660, %v625
        %668 = vst.msk [vmem:[#allocation3 + $0x38] sm:$0xff] %vm660, %v627
        %669 = vst.msk [vmem:[#allocation3 + $0x40] sm:$0xff] %vm660, %v629
        %670 = vst.msk [vmem:[#allocation3 + $0x48] sm:$0xff] %vm660, %v631
        %671 = vst.msk [vmem:[#allocation3 + $0x50] sm:$0xff] %vm660, %v633
        %672 = vst.msk [vmem:[#allocation3 + $0x58] sm:$0xff] %vm660, %v635
        %673 = vst.msk [vmem:[#allocation3 + $0x60] sm:$0xff] %vm660, %v637
        %674 = vst.msk [vmem:[#allocation3 + $0x68] sm:$0xff] %vm660, %v639
        %675 = vst.msk [vmem:[#allocation3 + $0x70] sm:$0xff] %vm660, %v641
        %676 = vst.msk [vmem:[#allocation3 + $0x78] sm:$0xff] %vm660, %v643
        %v678 = vrot.slane %v352, 1
        %v679 = vrot.slane %v353, 1
        %v680 = vsel %vm398, %v678, %v679
        %v681 = vrot.slane %v354, 1
        %v682 = vsel %vm398, %v679, %v681
        %683 = vrot.lane.b32.xlu0 %v406, 16
        %v684 = vpop.permute.xlu0 %683
        %685 = vrot.lane.b32.xlu0 %v408, 16
        %v686 = vpop.permute.xlu0 %685
        %687 = vrot.lane.b32.xlu0 %v411, 16
        %v688 = vpop.permute.xlu0 %687
        %689 = vrot.lane.b32.xlu0 %v413, 16
        %v690 = vpop.permute.xlu0 %689
        %691 = vrot.lane.b32.xlu0 %v416, 16
        %v692 = vpop.permute.xlu0 %691
        %693 = vrot.lane.b32.xlu0 %v418, 16
        %v694 = vpop.permute.xlu0 %693
        %695 = vrot.lane.b32.xlu0 %v421, 16
        %v696 = vpop.permute.xlu0 %695
        %697 = vrot.lane.b32.xlu0 %v423, 16
        %v698 = vpop.permute.xlu0 %697
        %699 = vrot.lane.b32.xlu0 %v426, 16
        %v700 = vpop.permute.xlu0 %699
        %701 = vrot.lane.b32.xlu0 %v428, 16
        %v702 = vpop.permute.xlu0 %701
        %703 = vrot.lane.b32.xlu0 %v431, 16
        %v704 = vpop.permute.xlu0 %703
        %705 = vrot.lane.b32.xlu0 %v433, 16
        %v706 = vpop.permute.xlu0 %705
        %707 = vrot.lane.b32.xlu0 %v436, 16
        %v708 = vpop.permute.xlu0 %707
        %709 = vrot.lane.b32.xlu0 %v438, 16
        %v710 = vpop.permute.xlu0 %709
        %711 = vrot.lane.b32.xlu0 %v680, 16
        %v712 = vpop.permute.xlu0 %711
        %713 = vrot.lane.b32.xlu0 %v682, 16
        %v714 = vpop.permute.xlu0 %713
        %vm731 = vcmask 162944
        %732 = vst.msk [vmem:[#allocation3] sm:$0xff] %vm731, %v684
        %733 = vst.msk [vmem:[#allocation3 + $0x8] sm:$0xff] %vm731, %v686
        %734 = vst.msk [vmem:[#allocation3 + $0x10] sm:$0xff] %vm731, %v688
        %735 = vst.msk [vmem:[#allocation3 + $0x18] sm:$0xff] %vm731, %v690
        %736 = vst.msk [vmem:[#allocation3 + $0x20] sm:$0xff] %vm731, %v692
        %737 = vst.msk [vmem:[#allocation3 + $0x28] sm:$0xff] %vm731, %v694
        %738 = vst.msk [vmem:[#allocation3 + $0x30] sm:$0xff] %vm731, %v696
        %739 = vst.msk [vmem:[#allocation3 + $0x38] sm:$0xff] %vm731, %v698
        %740 = vst.msk [vmem:[#allocation3 + $0x40] sm:$0xff] %vm731, %v700
        %741 = vst.msk [vmem:[#allocation3 + $0x48] sm:$0xff] %vm731, %v702
        %742 = vst.msk [vmem:[#allocation3 + $0x50] sm:$0xff] %vm731, %v704
        %743 = vst.msk [vmem:[#allocation3 + $0x58] sm:$0xff] %vm731, %v706
        %744 = vst.msk [vmem:[#allocation3 + $0x60] sm:$0xff] %vm731, %v708
        %745 = vst.msk [vmem:[#allocation3 + $0x68] sm:$0xff] %vm731, %v710
        %746 = vst.msk [vmem:[#allocation3 + $0x70] sm:$0xff] %vm731, %v712
        %747 = vst.msk [vmem:[#allocation3 + $0x78] sm:$0xff] %vm731, %v714
        %v748 = vrot.slane %v352, 2
        %v749 = vrot.slane %v353, 2
        %v750 = vsel %vm504, %v748, %v749
        %v751 = vrot.slane %v354, 2
        %v752 = vsel %vm504, %v749, %v751
        %753 = vrot.lane.b32.xlu0 %v512, 20
        %v754 = vpop.permute.xlu0 %753
        %755 = vrot.lane.b32.xlu0 %v514, 20
        %v756 = vpop.permute.xlu0 %755
        %757 = vrot.lane.b32.xlu0 %v517, 20
        %v758 = vpop.permute.xlu0 %757
        %759 = vrot.lane.b32.xlu0 %v519, 20
        %v760 = vpop.permute.xlu0 %759
        %761 = vrot.lane.b32.xlu0 %v522, 20
        %v762 = vpop.permute.xlu0 %761
        %763 = vrot.lane.b32.xlu0 %v524, 20
        %v764 = vpop.permute.xlu0 %763
        %765 = vrot.lane.b32.xlu0 %v527, 20
        %v766 = vpop.permute.xlu0 %765
        %767 = vrot.lane.b32.xlu0 %v529, 20
        %v768 = vpop.permute.xlu0 %767
        %769 = vrot.lane.b32.xlu0 %v532, 20
        %v770 = vpop.permute.xlu0 %769
        %771 = vrot.lane.b32.xlu0 %v534, 20
        %v772 = vpop.permute.xlu0 %771
        %773 = vrot.lane.b32.xlu0 %v537, 20
        %v774 = vpop.permute.xlu0 %773
        %775 = vrot.lane.b32.xlu0 %v539, 20
        %v776 = vpop.permute.xlu0 %775
        %777 = vrot.lane.b32.xlu0 %v542, 20
        %v778 = vpop.permute.xlu0 %777
        %779 = vrot.lane.b32.xlu0 %v544, 20
        %v780 = vpop.permute.xlu0 %779
        %781 = vrot.lane.b32.xlu0 %v750, 20
        %v782 = vpop.permute.xlu0 %781
        %783 = vrot.lane.b32.xlu0 %v752, 20
        %v784 = vpop.permute.xlu0 %783
        %vm801 = vcmask 195744
        %802 = vst.msk [vmem:[#allocation3] sm:$0xff] %vm801, %v754
        %803 = vst.msk [vmem:[#allocation3 + $0x8] sm:$0xff] %vm801, %v756
        %804 = vst.msk [vmem:[#allocation3 + $0x10] sm:$0xff] %vm801, %v758
        %805 = vst.msk [vmem:[#allocation3 + $0x18] sm:$0xff] %vm801, %v760
        %806 = vst.msk [vmem:[#allocation3 + $0x20] sm:$0xff] %vm801, %v762
        %807 = vst.msk [vmem:[#allocation3 + $0x28] sm:$0xff] %vm801, %v764
        %808 = vst.msk [vmem:[#allocation3 + $0x30] sm:$0xff] %vm801, %v766
        %809 = vst.msk [vmem:[#allocation3 + $0x38] sm:$0xff] %vm801, %v768
        %810 = vst.msk [vmem:[#allocation3 + $0x40] sm:$0xff] %vm801, %v770
        %811 = vst.msk [vmem:[#allocation3 + $0x48] sm:$0xff] %vm801, %v772
        %812 = vst.msk [vmem:[#allocation3 + $0x50] sm:$0xff] %vm801, %v774
        %813 = vst.msk [vmem:[#allocation3 + $0x58] sm:$0xff] %vm801, %v776
        %814 = vst.msk [vmem:[#allocation3 + $0x60] sm:$0xff] %vm801, %v778
        %815 = vst.msk [vmem:[#allocation3 + $0x68] sm:$0xff] %vm801, %v780
        %816 = vst.msk [vmem:[#allocation3 + $0x70] sm:$0xff] %vm801, %v782
        %817 = vst.msk [vmem:[#allocation3 + $0x78] sm:$0xff] %vm801, %v784
        %820 = vrot.lane.b32.xlu0 %v334, 24
        %v821 = vpop.permute.xlu0 %820
        %822 = vrot.lane.b32.xlu0 %v335, 24
        %v823 = vpop.permute.xlu0 %822
        %824 = vrot.lane.b32.xlu0 %v337, 24
        %v825 = vpop.permute.xlu0 %824
        %826 = vrot.lane.b32.xlu0 %v338, 24
        %v827 = vpop.permute.xlu0 %826
        %828 = vrot.lane.b32.xlu0 %v340, 24
        %v829 = vpop.permute.xlu0 %828
        %830 = vrot.lane.b32.xlu0 %v341, 24
        %v831 = vpop.permute.xlu0 %830
        %832 = vrot.lane.b32.xlu0 %v343, 24
        %v833 = vpop.permute.xlu0 %832
        %834 = vrot.lane.b32.xlu0 %v344, 24
        %v835 = vpop.permute.xlu0 %834
        %836 = vrot.lane.b32.xlu0 %v346, 24
        %v837 = vpop.permute.xlu0 %836
        %838 = vrot.lane.b32.xlu0 %v347, 24
        %v839 = vpop.permute.xlu0 %838
        %840 = vrot.lane.b32.xlu0 %v349, 24
        %v841 = vpop.permute.xlu0 %840
        %842 = vrot.lane.b32.xlu0 %v350, 24
        %v843 = vpop.permute.xlu0 %842
        %844 = vrot.lane.b32.xlu0 %v352, 24
        %v845 = vpop.permute.xlu0 %844
        %846 = vrot.lane.b32.xlu0 %v353, 24
        %v847 = vpop.permute.xlu0 %846
        %848 = vrot.lane.b32.xlu0 %v355, 24
        %v849 = vpop.permute.xlu0 %848
        %850 = vrot.lane.b32.xlu0 %v356, 24
        %v851 = vpop.permute.xlu0 %850
        %vm868 = vcmask 228544
        %869 = vst.msk [vmem:[#allocation3] sm:$0xff] %vm868, %v821
        %870 = vst.msk [vmem:[#allocation3 + $0x8] sm:$0xff] %vm868, %v823
        %871 = vst.msk [vmem:[#allocation3 + $0x10] sm:$0xff] %vm868, %v825
        %872 = vst.msk [vmem:[#allocation3 + $0x18] sm:$0xff] %vm868, %v827
        %873 = vst.msk [vmem:[#allocation3 + $0x20] sm:$0xff] %vm868, %v829
        %874 = vst.msk [vmem:[#allocation3 + $0x28] sm:$0xff] %vm868, %v831
        %875 = vst.msk [vmem:[#allocation3 + $0x30] sm:$0xff] %vm868, %v833
        %876 = vst.msk [vmem:[#allocation3 + $0x38] sm:$0xff] %vm868, %v835
        %877 = vst.msk [vmem:[#allocation3 + $0x40] sm:$0xff] %vm868, %v837
        %878 = vst.msk [vmem:[#allocation3 + $0x48] sm:$0xff] %vm868, %v839
        %879 = vst.msk [vmem:[#allocation3 + $0x50] sm:$0xff] %vm868, %v841
        %880 = vst.msk [vmem:[#allocation3 + $0x58] sm:$0xff] %vm868, %v843
        %881 = vst.msk [vmem:[#allocation3 + $0x60] sm:$0xff] %vm868, %v845
        %882 = vst.msk [vmem:[#allocation3 + $0x68] sm:$0xff] %vm868, %v847
        %883 = vst.msk [vmem:[#allocation3 + $0x70] sm:$0xff] %vm868, %v849
        %884 = vst.msk [vmem:[#allocation3 + $0x78] sm:$0xff] %vm868, %v851
        %v886 = vrot.slane %v355, 1
        %v887 = vrot.slane %v356, 1
        %v888 = vsel %vm398, %v886, %v887
        %v889 = vrot.slane %v357, 1
        %v890 = vsel %vm398, %v887, %v889
        %891 = vrot.lane.b32.xlu0 %v411, 28
        %v892 = vpop.permute.xlu0 %891
        %893 = vrot.lane.b32.xlu0 %v413, 28
        %v894 = vpop.permute.xlu0 %893
        %895 = vrot.lane.b32.xlu0 %v416, 28
        %v896 = vpop.permute.xlu0 %895
        %897 = vrot.lane.b32.xlu0 %v418, 28
        %v898 = vpop.permute.xlu0 %897
        %899 = vrot.lane.b32.xlu0 %v421, 28
        %v900 = vpop.permute.xlu0 %899
        %901 = vrot.lane.b32.xlu0 %v423, 28
        %v902 = vpop.permute.xlu0 %901
        %903 = vrot.lane.b32.xlu0 %v426, 28
        %v904 = vpop.permute.xlu0 %903
        %905 = vrot.lane.b32.xlu0 %v428, 28
        %v906 = vpop.permute.xlu0 %905
        %907 = vrot.lane.b32.xlu0 %v431, 28
        %v908 = vpop.permute.xlu0 %907
        %909 = vrot.lane.b32.xlu0 %v433, 28
        %v910 = vpop.permute.xlu0 %909
        %911 = vrot.lane.b32.xlu0 %v436, 28
        %v912 = vpop.permute.xlu0 %911
        %913 = vrot.lane.b32.xlu0 %v438, 28
        %v914 = vpop.permute.xlu0 %913
        %915 = vrot.lane.b32.xlu0 %v680, 28
        %v916 = vpop.permute.xlu0 %915
        %917 = vrot.lane.b32.xlu0 %v682, 28
        %v918 = vpop.permute.xlu0 %917
        %919 = vrot.lane.b32.xlu0 %v888, 28
        %v920 = vpop.permute.xlu0 %919
        %921 = vrot.lane.b32.xlu0 %v890, 28
        %v922 = vpop.permute.xlu0 %921
        %vm939 = vcmask 261344
        %940 = vst.msk [vmem:[#allocation3] sm:$0xff] %vm939, %v892
        %941 = vst.msk [vmem:[#allocation3 + $0x8] sm:$0xff] %vm939, %v894
        %942 = vst.msk [vmem:[#allocation3 + $0x10] sm:$0xff] %vm939, %v896
        %943 = vst.msk [vmem:[#allocation3 + $0x18] sm:$0xff] %vm939, %v898
        %944 = vst.msk [vmem:[#allocation3 + $0x20] sm:$0xff] %vm939, %v900
        %945 = vst.msk [vmem:[#allocation3 + $0x28] sm:$0xff] %vm939, %v902
        %946 = vst.msk [vmem:[#allocation3 + $0x30] sm:$0xff] %vm939, %v904
        %947 = vst.msk [vmem:[#allocation3 + $0x38] sm:$0xff] %vm939, %v906
        %948 = vst.msk [vmem:[#allocation3 + $0x40] sm:$0xff] %vm939, %v908
        %949 = vst.msk [vmem:[#allocation3 + $0x48] sm:$0xff] %vm939, %v910
        %950 = vst.msk [vmem:[#allocation3 + $0x50] sm:$0xff] %vm939, %v912
        %951 = vst.msk [vmem:[#allocation3 + $0x58] sm:$0xff] %vm939, %v914
        %952 = vst.msk [vmem:[#allocation3 + $0x60] sm:$0xff] %vm939, %v916
        %953 = vst.msk [vmem:[#allocation3 + $0x68] sm:$0xff] %vm939, %v918
        %954 = vst.msk [vmem:[#allocation3 + $0x70] sm:$0xff] %vm939, %v920
        %955 = vst.msk [vmem:[#allocation3 + $0x78] sm:$0xff] %vm939, %v922
        %v956 = vrot.slane %v355, 2
        %v957 = vrot.slane %v356, 2
        %v958 = vsel %vm504, %v956, %v957
        %v959 = vrot.slane %v357, 2
        %v960 = vsel %vm504, %v957, %v959
        %961 = vrot.lane.b32.xlu0 %v517, 32
        %v962 = vpop.permute.xlu0 %961
        %963 = vrot.lane.b32.xlu0 %v519, 32
        %v964 = vpop.permute.xlu0 %963
        %965 = vrot.lane.b32.xlu0 %v522, 32
        %v966 = vpop.permute.xlu0 %965
        %967 = vrot.lane.b32.xlu0 %v524, 32
        %v968 = vpop.permute.xlu0 %967
        %969 = vrot.lane.b32.xlu0 %v527, 32
        %v970 = vpop.permute.xlu0 %969
        %971 = vrot.lane.b32.xlu0 %v529, 32
        %v972 = vpop.permute.xlu0 %971
        %973 = vrot.lane.b32.xlu0 %v532, 32
        %v974 = vpop.permute.xlu0 %973
        %975 = vrot.lane.b32.xlu0 %v534, 32
        %v976 = vpop.permute.xlu0 %975
        %977 = vrot.lane.b32.xlu0 %v537, 32
        %v978 = vpop.permute.xlu0 %977
        %979 = vrot.lane.b32.xlu0 %v539, 32
        %v980 = vpop.permute.xlu0 %979
        %981 = vrot.lane.b32.xlu0 %v542, 32
        %v982 = vpop.permute.xlu0 %981
        %983 = vrot.lane.b32.xlu0 %v544, 32
        %v984 = vpop.permute.xlu0 %983
        %985 = vrot.lane.b32.xlu0 %v750, 32
        %v986 = vpop.permute.xlu0 %985
        %987 = vrot.lane.b32.xlu0 %v752, 32
        %v988 = vpop.permute.xlu0 %987
        %989 = vrot.lane.b32.xlu0 %v958, 32
        %v990 = vpop.permute.xlu0 %989
        %991 = vrot.lane.b32.xlu0 %v960, 32
        %v992 = vpop.permute.xlu0 %991
        %vm1009 = vcmask 294144
        %1010 = vst.msk [vmem:[#allocation3] sm:$0xff] %vm1009, %v962
        %1011 = vst.msk [vmem:[#allocation3 + $0x8] sm:$0xff] %vm1009, %v964
        %1012 = vst.msk [vmem:[#allocation3 + $0x10] sm:$0xff] %vm1009, %v966
        %1013 = vst.msk [vmem:[#allocation3 + $0x18] sm:$0xff] %vm1009, %v968
        %1014 = vst.msk [vmem:[#allocation3 + $0x20] sm:$0xff] %vm1009, %v970
        %1015 = vst.msk [vmem:[#allocation3 + $0x28] sm:$0xff] %vm1009, %v972
        %1016 = vst.msk [vmem:[#allocation3 + $0x30] sm:$0xff] %vm1009, %v974
        %1017 = vst.msk [vmem:[#allocation3 + $0x38] sm:$0xff] %vm1009, %v976
        %1018 = vst.msk [vmem:[#allocation3 + $0x40] sm:$0xff] %vm1009, %v978
        %1019 = vst.msk [vmem:[#allocation3 + $0x48] sm:$0xff] %vm1009, %v980
        %1020 = vst.msk [vmem:[#allocation3 + $0x50] sm:$0xff] %vm1009, %v982
        %1021 = vst.msk [vmem:[#allocation3 + $0x58] sm:$0xff] %vm1009, %v984
        %1022 = vst.msk [vmem:[#allocation3 + $0x60] sm:$0xff] %vm1009, %v986
        %1023 = vst.msk [vmem:[#allocation3 + $0x68] sm:$0xff] %vm1009, %v988
        %1024 = vst.msk [vmem:[#allocation3 + $0x70] sm:$0xff] %vm1009, %v990
        %1025 = vst.msk [vmem:[#allocation3 + $0x78] sm:$0xff] %vm1009, %v992
        %v1026 = vld [vmem:[#allocation3] sm:$0xff]
        %v1027 = vld [vmem:[#allocation3 + $0x8] sm:$0xff]
        %v1028 = vld [vmem:[#allocation3 + $0x10] sm:$0xff]
        %v1029 = vld [vmem:[#allocation3 + $0x18] sm:$0xff]
        %v1030 = vld [vmem:[#allocation3 + $0x20] sm:$0xff]
        %v1031 = vld [vmem:[#allocation3 + $0x28] sm:$0xff]
        %v1032 = vld [vmem:[#allocation3 + $0x30] sm:$0xff]
        %v1033 = vld [vmem:[#allocation3 + $0x38] sm:$0xff]
        %v1034 = vld [vmem:[#allocation3 + $0x40] sm:$0xff]
        %v1035 = vld [vmem:[#allocation3 + $0x48] sm:$0xff]
        %v1036 = vld [vmem:[#allocation3 + $0x50] sm:$0xff]
        %v1037 = vld [vmem:[#allocation3 + $0x58] sm:$0xff]
        %v1038 = vld [vmem:[#allocation3 + $0x60] sm:$0xff]
        %v1039 = vld [vmem:[#allocation3 + $0x68] sm:$0xff]
        %v1040 = vld [vmem:[#allocation3 + $0x70] sm:$0xff]
        %v1041 = vld [vmem:[#allocation3 + $0x78] sm:$0xff]
        %v1042 = vld [vmem:[%s1] sm:$0xff]
        %v1043 = vld [vmem:[%s1 + $0x8] sm:$0xff]
        %v1044 = vld [vmem:[%s1 + $0x10] sm:$0xff]
        %v1045 = vld [vmem:[%s1 + $0x18] sm:$0xff]
        %v1046 = vld [vmem:[%s1 + $0x20] sm:$0xf]
        %vm1047 = vcmask 293888
        %v1049 = vsel %vm1047, %v1026, 0
        %v1052 = vsel %vm1047, %v1027, 0
        %v1055 = vsel %vm1047, %v1028, 0
        %v1058 = vsel %vm1047, %v1029, 0
        %v1061 = vsel %vm1047, %v1030, 0
        %v1064 = vsel %vm1047, %v1031, 0
        %v1067 = vsel %vm1047, %v1032, 0
        %v1070 = vsel %vm1047, %v1033, 0
        %v1073 = vsel %vm1047, %v1034, 0
        %v1076 = vsel %vm1047, %v1035, 0
        %v1079 = vsel %vm1047, %v1036, 0
        %v1082 = vsel %vm1047, %v1037, 0
        %v1085 = vsel %vm1047, %v1038, 0
        %v1088 = vsel %vm1047, %v1039, 0
        %v1091 = vsel %vm1047, %v1040, 0
        %v1094 = vsel %vm1047, %v1041, 0
        %vm1096 = vcmask 1043456
        %v1098 = vsel %vm1096, %v1046, 0
        %1100 = vmatprep.subr.mxu0 0.0
        %1101 = vmatpush1.msra.mxu0 0.0
        %1102 = vmatprep.subr.mxu0 0.0
        %1103 = vmatpush1.msra.mxu0 0.0
        %1104 = vmatprep.subr.mxu0 0.0
        %1105 = vmatpush1.msra.mxu0 0.0
        %1106 = vmatprep.subr.mxu0 0.0
        %1107 = vmatpush1.msra.mxu0 0.0
        %1108 = vmatprep.subr.mxu0 0.0
        %1109 = vmatpush1.msra.mxu0 0.0
        %1110 = vmatprep.subr.mxu0 0.0
        %1111 = vmatpush1.msra.mxu0 0.0
        %1112 = vmatprep.subr.mxu0 0.0
        %1113 = vmatpush1.msra.mxu0 0.0
        %1114 = vmatprep.subr.mxu0 0.0
        %1115 = vmatpush1.msra.mxu0 0.0
        %1116 = vmatprep.subr.mxu0 0.0
        %1117 = vmatpush1.msra.mxu0 0.0
        %1118 = vmatprep.subr.mxu0 0.0
        %1119 = vmatpush1.msra.mxu0 0.0
        %1120 = vmatprep.subr.mxu0 0.0
        %1121 = vmatpush1.msra.mxu0 0.0
        %1122 = vmatprep.subr.mxu0 0.0
        %1123 = vmatpush1.msra.mxu0 %v1098
        %1124 = vmatprep.subr.mxu0 0.0
        %1125 = vmatpush1.msra.mxu0 %v1045
        %1126 = vmatprep.subr.mxu0 0.0
        %1127 = vmatpush1.msra.mxu0 %v1044
        %1128 = vmatprep.subr.mxu0 0.0
        %1129 = vmatpush1.msra.mxu0 %v1043
        %1130 = vmatprep.subr.mxu0 0.0
        %1131 = vmatpush1.msra.mxu0 %v1042
        %1132 = vmatprep.subr.mxu0 0.0
        %1133 = vmatpush2.msra.mxu0 0.0
        %1134 = vmatprep.subr.mxu0 0.0
        %1135 = vmatpush2.msra.mxu0 0.0
        %1136 = vmatprep.subr.mxu0 0.0
        %1137 = vmatpush2.msra.mxu0 0.0
        %1138 = vmatprep.subr.mxu0 0.0
        %1139 = vmatpush2.msra.mxu0 0.0
        %1140 = vmatprep.subr.mxu0 0.0
        %1141 = vmatpush2.msra.mxu0 0.0
        %1142 = vmatprep.subr.mxu0 0.0
        %1143 = vmatpush2.msra.mxu0 0.0
        %1144 = vmatprep.subr.mxu0 0.0
        %1145 = vmatpush2.msra.mxu0 0.0
        %1146 = vmatprep.subr.mxu0 0.0
        %1147 = vmatpush2.msra.mxu0 0.0
        %1148 = vmatprep.subr.mxu0 0.0
        %1149 = vmatpush2.msra.mxu0 0.0
        %1150 = vmatprep.subr.mxu0 0.0
        %1151 = vmatpush2.msra.mxu0 0.0
        %1152 = vmatprep.subr.mxu0 0.0
        %1153 = vmatpush2.msra.mxu0 0.0
        %1154 = vmatprep.subr.mxu0 0.0
        %1155 = vmatpush2.msra.mxu0 0.0
        %1156 = vmatprep.subr.mxu0 0.0
        %1157 = vmatpush2.msra.mxu0 0.0
        %1158 = vmatprep.subr.mxu0 0.0
        %1159 = vmatpush2.msra.mxu0 0.0
        %1160 = vmatprep.subr.mxu0 0.0
        %1161 = vmatpush2.msra.mxu0 0.0
        %1162 = vmatprep.subr.mxu0 0.0
        %1163 = vmatpush2.msra.mxu0 0.0
        %1164 = vmatprep.mubr.f32.mxu0 0.0
        %1165 = vmatmul.mubr.f32.gmra.mxu0 %v1049
        %v1166 = vpop.f32.mrf.mxu0
        %v1167 = vadd.f32 0.0, %v1166
        %v1168 = vpop.f32.mrf.mxu0
        %1169 = vmatprep.mubr.f32.mxu0 0.0
        %1170 = vmatmul.mubr.f32.gmra.mxu0 %v1052
        %v1171 = vpop.f32.mrf.mxu0
        %v1172 = vadd.f32 0.0, %v1171
        %v1173 = vpop.f32.mrf.mxu0
        %1174 = vmatprep.mubr.f32.mxu0 0.0
        %1175 = vmatmul.mubr.f32.gmra.mxu0 %v1055
        %v1176 = vpop.f32.mrf.mxu0
        %v1177 = vadd.f32 0.0, %v1176
        %v1178 = vpop.f32.mrf.mxu0
        %1179 = vmatprep.mubr.f32.mxu0 0.0
        %1180 = vmatmul.mubr.f32.gmra.mxu0 %v1058
        %v1181 = vpop.f32.mrf.mxu0
        %v1182 = vadd.f32 0.0, %v1181
        %v1183 = vpop.f32.mrf.mxu0
        %1184 = vmatprep.mubr.f32.mxu0 0.0
        %1185 = vmatmul.mubr.f32.gmra.mxu0 %v1061
        %v1186 = vpop.f32.mrf.mxu0
        %v1187 = vadd.f32 0.0, %v1186
        %v1188 = vpop.f32.mrf.mxu0
        %1189 = vmatprep.mubr.f32.mxu0 0.0
        %1190 = vmatmul.mubr.f32.gmra.mxu0 %v1064
        %v1191 = vpop.f32.mrf.mxu0
        %v1192 = vadd.f32 0.0, %v1191
        %v1193 = vpop.f32.mrf.mxu0
        %1194 = vmatprep.mubr.f32.mxu0 0.0
        %1195 = vmatmul.mubr.f32.gmra.mxu0 %v1067
        %v1196 = vpop.f32.mrf.mxu0
        %v1197 = vadd.f32 0.0, %v1196
        %v1198 = vpop.f32.mrf.mxu0
        %1199 = vmatprep.mubr.f32.mxu0 0.0
        %1200 = vmatmul.mubr.f32.gmra.mxu0 %v1070
        %v1201 = vpop.f32.mrf.mxu0
        %v1202 = vadd.f32 0.0, %v1201
        %v1203 = vpop.f32.mrf.mxu0
        %1204 = vmatprep.mubr.f32.mxu0 0.0
        %1205 = vmatmul.mubr.f32.gmra.mxu0 %v1073
        %v1206 = vpop.f32.mrf.mxu0
        %v1207 = vadd.f32 0.0, %v1206
        %v1208 = vpop.f32.mrf.mxu0
        %1209 = vmatprep.mubr.f32.mxu0 0.0
        %1210 = vmatmul.mubr.f32.gmra.mxu0 %v1076
        %v1211 = vpop.f32.mrf.mxu0
        %v1212 = vadd.f32 0.0, %v1211
        %v1213 = vpop.f32.mrf.mxu0
        %1214 = vmatprep.mubr.f32.mxu0 0.0
        %1215 = vmatmul.mubr.f32.gmra.mxu0 %v1079
        %v1216 = vpop.f32.mrf.mxu0
        %v1217 = vadd.f32 0.0, %v1216
        %v1218 = vpop.f32.mrf.mxu0
        %1219 = vmatprep.mubr.f32.mxu0 0.0
        %1220 = vmatmul.mubr.f32.gmra.mxu0 %v1082
        %v1221 = vpop.f32.mrf.mxu0
        %v1222 = vadd.f32 0.0, %v1221
        %v1223 = vpop.f32.mrf.mxu0
        %1224 = vmatprep.mubr.f32.mxu0 0.0
        %1225 = vmatmul.mubr.f32.gmra.mxu0 %v1085
        %v1226 = vpop.f32.mrf.mxu0
        %v1227 = vadd.f32 0.0, %v1226
        %v1228 = vpop.f32.mrf.mxu0
        %1229 = vmatprep.mubr.f32.mxu0 0.0
        %1230 = vmatmul.mubr.f32.gmra.mxu0 %v1088
        %v1231 = vpop.f32.mrf.mxu0
        %v1232 = vadd.f32 0.0, %v1231
        %v1233 = vpop.f32.mrf.mxu0
        %1234 = vmatprep.mubr.f32.mxu0 0.0
        %1235 = vmatmul.mubr.f32.gmra.mxu0 %v1091
        %v1236 = vpop.f32.mrf.mxu0
        %v1237 = vadd.f32 0.0, %v1236
        %v1238 = vpop.f32.mrf.mxu0
        %1239 = vmatprep.mubr.f32.mxu0 0.0
        %1240 = vmatmul.mubr.f32.gmra.mxu0 %v1094
        %v1241 = vpop.f32.mrf.mxu0
        %v1242 = vadd.f32 0.0, %v1241
        %v1243 = vpop.f32.mrf.mxu0
        %1244 = vdwg.mxu0
        %1245 = vst [vmem:[%s150] sm:$0xff] %v1167
        %1246 = vst [vmem:[%s150 + $0x8] sm:$0xff] %v1172
        %1247 = vst [vmem:[%s150 + $0x10] sm:$0xff] %v1177
        %1248 = vst [vmem:[%s150 + $0x18] sm:$0xff] %v1182
        %1249 = vst [vmem:[%s150 + $0x20] sm:$0xff] %v1187
        %1250 = vst [vmem:[%s150 + $0x28] sm:$0xff] %v1192
        %1251 = vst [vmem:[%s150 + $0x30] sm:$0xff] %v1197
        %1252 = vst [vmem:[%s150 + $0x38] sm:$0xff] %v1202
        %1253 = vst [vmem:[%s150 + $0x40] sm:$0xff] %v1207
        %1254 = vst [vmem:[%s150 + $0x48] sm:$0xff] %v1212
        %1255 = vst [vmem:[%s150 + $0x50] sm:$0xff] %v1217
        %1256 = vst [vmem:[%s150 + $0x58] sm:$0xff] %v1222
        %1257 = vst [vmem:[%s150 + $0x60] sm:$0xff] %v1227
        %1258 = vst [vmem:[%s150 + $0x68] sm:$0xff] %v1232
        %1259 = vst [vmem:[%s150 + $0x70] sm:$0xff] %v1237
        %1260 = vst [vmem:[%s150 + $0x78] sm:$0xff] %v1242
        %s1261 = sand.u32 %s85, 1
        %s1262 = scalar_lea.sflag [#allocation5], %s1261
        %s1263 = sand.u32 %s85, 1
        %s1264 = smul.addr %s1263, 128
        %s1265 = scalar_lea.vmem [#allocation4], %s1264
        // Predicated region
        $region69: #{tpu_custom_call.1} parent=27 // pred_check
          %p1266 = pneg %p95
        $region70: #{tpu_custom_call.1} parent=27 // pred_check_branch
          %1268 = sbr.rel (%p1266) target = $region72
        $region71: #{tpu_custom_call.1} parent=27 // pred_region
          %s1269 = smul.u32 16, %s21
          %s1271 = ssub.s32 2048, 2048
          %1272 = vsyncadd %s1262, %s1271
          %s1273 = smul.addr %s20, 32
          %s1274 = sadd.s32 %s1269, %s1273
          %s1275 = smul.addr %s1274, 128
          %s1276 = scalar_lea.hbm %s2, %s1275
          %s1277 = sshll.u32 %s1265, 4
          %s1278 = int_to_ptr.vmem [resolvable:$true] %s1277
          %1283 = dma.vmem_to_hbm [thread:$0]  %s1278, 2048, %s1276, %s1262, 128, 128, 8
        $region72: #{tpu_custom_call.1} parent=27 // pred_fallthru
          _
      $region28: #{tpu_custom_call.1} parent=5 // pred_fallthru
        _
      %p1284 = scmp.le.s32.totalorder 2, %s11
      // Predicated region
      $region73: #{tpu_custom_call.1} parent=5 // pred_check
        %p1285 = pneg %p1284
      $region74: #{tpu_custom_call.1} parent=5 // pred_check_branch
        %1287 = sbr.rel (%p1285) target = $region76
      $region75: #{tpu_custom_call.1} parent=5 // pred_region
        %s1288 = ssub.s32 %s11, 2
        // Predicated region
        $region77: #{tpu_custom_call.1} parent=75 // pred_check
          %p1289 = pneg %p101
        $region78: #{tpu_custom_call.1} parent=75 // pred_check_branch
          %1291 = sbr.rel (%p1289) target = $region80
        $region79: #{tpu_custom_call.1} parent=75 // pred_region
          %s1292 = sand.u32 %s86, 1
          %s1293 = scalar_lea.sflag [#allocation5], %s1292
          %s1294 = sand.u32 %s86, 1
          %s1295 = smul.addr %s1294, 128
          %s1296 = scalar_lea.vmem [#allocation4], %s1295
          %1297 = dma.done %s1293, 2048
        $region80: #{tpu_custom_call.1} parent=75 // pred_fallthru
          _
      $region76: #{tpu_custom_call.1} parent=5 // pred_fallthru
        _
    $region6: #{tpu_custom_call.1} parent=1 // loop_footer
      %s15 = sadd.s32 1, %s11
    $region7: #{tpu_custom_call.1} parent=1 // loop_footer_branch
      %10 = sbr.rel target = $region3
    $region8: #{tpu_custom_call.1} parent=1 // loop_exit
      _
    %1298 = vsyncpa [#allocation5], 1
    %s1299 = scalar_lea.sflag [#allocation5], 1
    %1300 = vsyncpa %s1299, 1

</llo_original>
